<compile_context>
chip_gen: v7x
topology: tpu7x:2x2x1
jax: 0.10.0
libtpu: 0.0.40
codegen_flags: <defaults>
</compile_context>

<pallas_src>
import functools

import numpy as np
import jax
import jax.numpy as jnp
from jax.experimental import pallas as pl
from jax.experimental.pallas import tpu as pltpu

EPS = 1e-5


# ------------------------------ small helpers --------------------------------

def _round_up(x, m):
    return (x + m - 1) // m * m


def _front_pad(w, dil):
    """Front padding of the flat y1 staging buffer.

    Chosen so that (a) tap reads may under-run the tile base by up to `dil`
    elements without going out of bounds and (b) the tile region starts at a
    lane-aligned (multiple-of-128) offset.
    """
    halo_w = dil * w
    return _round_up(halo_w + dil, 128) - halo_w


def _buffer_len(th, w, dil):
    halo_w = dil * w
    pad0 = _front_pad(w, dil)
    return _round_up(pad0 + 2 * halo_w + th * w + dil, 128)


def _vmem_capacity_bytes():
    try:
        info = pltpu.get_tpu_info()
        cap = getattr(info, "vmem_capacity_bytes", None)
        if cap:
            return int(cap)
    except Exception:
        pass
    return 64 * 2 ** 20          # conservative: v7x per-core physical VMEM


def _vmem_tile_estimate(th, w, dil, cin, cout, planes, io_bytes, cdt_bytes,
                        stack_taps):
    thw = th * w
    halo_w = dil * w
    blocks = 2 * (cin * thw + cin * 2 * halo_w + cout * thw) * io_bytes
    weights = 2 * ((planes * cin + 9 * planes * planes + cout * planes) * cdt_bytes
                   + (2 * planes + cout) * 4)
    scratch = planes * _buffer_len(th, w, dil) * cdt_bytes
    temps = (2 * planes + 2 * cout) * thw * 4            # f32 live temporaries
    if stack_taps:
        temps += 9 * planes * thw * cdt_bytes            # stacked tap windows
    return blocks + weights + scratch + temps


def _choose_tile_rows(h, w, dil, cin, cout, planes, io_bytes, cdt_bytes,
                      stack_taps, budget):
    cands = []
    for th in range(1, h + 1):
        if h % th or th < dil:
            continue
        if th != h and (th * w) % 128 != 0:              # keep lane-dense tiles
            continue
        cands.append(th)
    if not cands:
        return h
    fitting = [th for th in cands
               if _vmem_tile_estimate(th, w, dil, cin, cout, planes,
                                      io_bytes, cdt_bytes, stack_taps) <= budget]
    return max(fitting) if fitting else min(cands)


# ------------------------------ Pallas kernel ---------------------------------

def _bottleneck_kernel(x_ref, xh_ref, w1_ref, b1_ref, w2_ref, b2_ref, w3_ref,
                       b3_ref, o_ref, y1pad_ref, *, W, dil, TH, stack_taps):
    """Fused Bottleneck forward for one H-tile of one image.

    Activation layout: (channels, tile_rows*W) -- pixels on the lane axis.
      x_ref     : (1, Cin, TH*W)          io dtype  tile rows (also residual)
      xh_ref    : (1, 1, Cin, 2*dil*W)    io dtype  halo rows (top|bottom)
      w1_ref    : (planes, Cin)           cdt  conv1 weight * bn1 scale
      b1_ref    : (planes, 1)             f32  bn1 shift
      w2_ref    : (planes, 9*planes) or (9, planes, planes)  cdt
      b2_ref    : (planes, 1)             f32  bn2 shift
      w3_ref    : (cout, planes)          cdt  conv3 weight * bn3 scale
      b3_ref    : (cout, 1)               f32  bn3 shift
      o_ref     : (1, cout, TH*W)         io dtype  output tile
      y1pad_ref : (planes, buf_len)       cdt  VMEM staging buffer for y1
    """
    planes = y1pad_ref.shape[0]
    THW = TH * W
    halo_w = dil * W
    pad0 = _front_pad(W, dil)
    base_tile = pad0 + halo_w                 # start of the tile's y1 rows
    base_bot = base_tile + THW                # start of the bottom halo rows
    content_end = base_bot + halo_w
    buf_len = y1pad_ref.shape[1]
    cdt = w1_ref.dtype                        # matmul compute dtype (bf16/f32)

    ht = pl.program_id(1)
    last = pl.num_programs(1) - 1

    x = x_ref[0]                                                   # (Cin, THW)
    w1 = w1_ref[...]

    # --- conv1 (1x1) + BN1 + ReLU on the tile rows ---------------------------
    y1 = jnp.dot(w1, x.astype(cdt), preferred_element_type=jnp.float32)
    y1 = jnp.maximum(y1 + b1_ref[...], 0.0)                        # (P, THW) f32

    # --- conv1 + BN1 + ReLU recomputed on the 2*dil halo rows ----------------
    xh = xh_ref[0, 0]                                              # (Cin, 2*halo_w)
    y1h = jnp.dot(w1, xh.astype(cdt), preferred_element_type=jnp.float32)
    y1h = jnp.maximum(y1h + b1_ref[...], 0.0)
    top_ok = (ht > 0).astype(jnp.float32)       # above first tile: conv zero-pad
    bot_ok = (ht < last).astype(jnp.float32)    # below last tile : conv zero-pad

    # --- stage y1 (+ halos) into the padded VMEM buffer (compute dtype) ------
    # Only the small front/back pads are zeroed; the content is overwritten.
    y1pad_ref[:, 0:pad0] = jnp.zeros((planes, pad0), cdt)
    y1pad_ref[:, pad0:base_tile] = (y1h[:, :halo_w] * top_ok).astype(cdt)
    y1pad_ref[:, base_tile:base_bot] = y1.astype(cdt)
    y1pad_ref[:, base_bot:content_end] = (y1h[:, halo_w:] * bot_ok).astype(cdt)
    y1pad_ref[:, content_end:buf_len] = jnp.zeros(
        (planes, buf_len - content_end), cdt)

    # --- conv2: 3x3 dilated conv as shifted, column-masked windows -----------
    col = jax.lax.broadcasted_iota(jnp.int32, (1, THW), 1) % W      # dest column
    mask_l = col >= dil                     # valid destinations for dx = -dil
    mask_r = col < (W - dil)                # valid destinations for dx = +dil

    def tap_window(ky, kx):
        start = base_tile + (ky - 1) * halo_w + (kx - 1) * dil
        win = y1pad_ref[:, start:start + THW]                       # (P, THW)
        if kx == 0:
            win = jnp.where(mask_l, win, jnp.zeros_like(win))
        elif kx == 2:
            win = jnp.where(mask_r, win, jnp.zeros_like(win))
        return win

    if stack_taps:
        # One MXU matmul with K = 9*planes instead of 9 skinny matmuls.
        stacked = jnp.concatenate(
            [tap_window(ky, kx) for ky in range(3) for kx in range(3)], axis=0)
        acc = jnp.dot(w2_ref[...], stacked, preferred_element_type=jnp.float32)
    else:
        acc = jnp.zeros((planes, THW), jnp.float32)
        for ky in range(3):
            for kx in range(3):
                acc = acc + jnp.dot(w2_ref[ky * 3 + kx], tap_window(ky, kx),
                                    preferred_element_type=jnp.float32)
    y2 = jnp.maximum(acc + b2_ref[...], 0.0)                        # (P, THW) f32

    # --- conv3 (1x1) + BN3 + identity residual + ReLU ------------------------
    y3 = jnp.dot(w3_ref[...], y2.astype(cdt),
                 preferred_element_type=jnp.float32)
    y3 = y3 + b3_ref[...] + x.astype(jnp.float32)                   # residual f32
    o_ref[0] = jnp.maximum(y3, 0.0).astype(o_ref.dtype)


# --------------------------------- wrapper ------------------------------------

def bottleneck_forward(x_nchw, params, stride=1, dilation=1, *,
                       io_dtype=jnp.float32, tile_rows=None, stack_taps=None):
    """Pallas implementation of Bottleneck.forward (downsample=None)."""
    n, cin, h, w = x_nchw.shape
    planes = params["w1"].shape[0]
    cout = params["w3"].shape[0]
    if stride != 1 or cin != cout:
        # TODO(synk): downsample path (projection residual) not implemented.
        raise NotImplementedError(
            "downsample=None requires stride == 1 and inplanes == 4 * planes")
    if not 1 <= dilation <= h:
        raise NotImplementedError("expect 1 <= dilation <= H")

    cdt = params["w1"].dtype
    io_bytes = jnp.dtype(io_dtype).itemsize
    cdt_bytes = jnp.dtype(cdt).itemsize
    if stack_taps is None:
        stack_taps = planes <= 128      # MXU-fill trick pays off for small K only

    cap = _vmem_capacity_bytes()
    if tile_rows is None:
        th = _choose_tile_rows(h, w, dilation, cin, cout, planes,
                               io_bytes, cdt_bytes, stack_taps,
                               budget=int(0.45 * cap))
    else:
        th = int(tile_rows)
        if h % th or th < dilation or (th != h and (th * w) % 128 != 0):
            raise ValueError("tile_rows must divide H, be >= dilation, and give"
                             " a lane-aligned tile (tile_rows*W % 128 == 0)"
                             " unless it equals H")
    n_ht = h // th
    thw = th * w
    halo_w = dilation * w
    buf_len = _buffer_len(th, w, dilation)

    # Lane-dense (C, H*W) activation layout; optional bf16 I/O.
    x_io = x_nchw.astype(io_dtype)
    x_flat = x_io.reshape(n, cin, h * w)

    # Per-tile halo rows (`dilation` rows above and below each tile).  Image
    # boundaries get zero rows; the kernel additionally masks them so the
    # conv2 zero padding is exact.
    xr = x_io.reshape(n, cin, n_ht, th, w)
    zrows = jnp.zeros((n, cin, 1, dilation, w), io_dtype)
    top = jnp.concatenate([zrows, xr[:, :, :-1, th - dilation:, :]], axis=2)
    bot = jnp.concatenate([xr[:, :, 1:, :dilation, :], zrows], axis=2)
    x_halo = jnp.concatenate([top, bot], axis=3)        # (n, cin, n_ht, 2*dil, w)
    x_halo = jnp.transpose(x_halo, (0, 2, 1, 3, 4)).reshape(
        n, n_ht, cin, 2 * halo_w)

    w2 = params["w2"]                                   # (9, planes, planes)
    if stack_taps:
        # column order = tap-major then input channel, matching the in-kernel
        # concatenation order t = ky*3 + kx.
        w2 = jnp.transpose(w2, (1, 0, 2)).reshape(planes, 9 * planes)
        w2_spec = pl.BlockSpec((planes, 9 * planes), lambda i, j: (0, 0))
    else:
        w2_spec = pl.BlockSpec((9, planes, planes), lambda i, j: (0, 0, 0))

    kernel = functools.partial(_bottleneck_kernel, W=w, dil=dilation, TH=th,
                               stack_taps=stack_taps)

    need = _vmem_tile_estimate(th, w, dilation, cin, cout, planes,
                               io_bytes, cdt_bytes, stack_taps)
    vmem_limit = int(min(0.75 * cap, max(2 * need, 16 * 2 ** 20)))

    out = pl.pallas_call(
        kernel,
        out_shape=jax.ShapeDtypeStruct((n, cout, h * w), io_dtype),
        grid=(n, n_ht),
        in_specs=[
            pl.BlockSpec((1, cin, thw), lambda i, j: (i, 0, j)),
            pl.BlockSpec((1, 1, cin, 2 * halo_w), lambda i, j: (i, j, 0, 0)),
            pl.BlockSpec((planes, cin), lambda i, j: (0, 0)),
            pl.BlockSpec((planes, 1), lambda i, j: (0, 0)),
            w2_spec,
            pl.BlockSpec((planes, 1), lambda i, j: (0, 0)),
            pl.BlockSpec((cout, planes), lambda i, j: (0, 0)),
            pl.BlockSpec((cout, 1), lambda i, j: (0, 0)),
        ],
        out_specs=pl.BlockSpec((1, cout, thw), lambda i, j: (i, 0, j)),
        scratch_shapes=[pltpu.VMEM((planes, buf_len), cdt)],
        compiler_params=pltpu.CompilerParams(
            dimension_semantics=("parallel", "parallel"),
            vmem_limit_bytes=vmem_limit),
    )(x_flat, x_halo, params["w1"], params["b1"], w2, params["b2"],
      params["w3"], params["b3"])
    return out.reshape(n, cout, h, w)


# --------------------------- parameter handling --------------------------------

def _bn_fold(gamma, beta, mean, var):
    scale = gamma / jnp.sqrt(var + EPS)
    shift = beta - mean * scale
    return scale, shift


def prepare_params(raw, compute_dtype=jnp.bfloat16):
    """Fold frozen-BN scale into conv weights; cast matmul weights."""
    planes = raw["w1"].shape[0]
    s1, t1 = _bn_fold(*raw["bn1"])
    s2, t2 = _bn_fold(*raw["bn2"])
    s3, t3 = _bn_fold(*raw["bn3"])

    w1 = raw["w1"][:, :, 0, 0]                                  # (planes, inplanes)
    w3 = raw["w3"][:, :, 0, 0]                                  # (4*planes, planes)
    # (out,in,ky,kx) -> (ky,kx,out,in) -> (9, out, in); tap index t = ky*3+kx
    w2 = jnp.transpose(raw["w2"], (2, 3, 0, 1)).reshape(9, planes, planes)

    return {
        "w1": (w1 * s1[:, None]).astype(compute_dtype),
        "w2": (w2 * s2[None, :, None]).astype(compute_dtype),
        "w3": (w3 * s3[:, None]).astype(compute_dtype),
        "b1": t1[:, None].astype(jnp.float32),
        "b2": t2[:, None].astype(jnp.float32),
        "b3": t3[:, None].astype(jnp.float32),
    }


def _init_bn(key, c):
    k1, k2, k3, k4 = jax.random.split(key, 4)
    gamma = jax.random.uniform(k1, (c,), jnp.float32, 0.5, 1.5)
    beta = jax.random.normal(k2, (c,), jnp.float32) * 0.1
    mean = jax.random.normal(k3, (c,), jnp.float32) * 0.1
    var = jax.random.uniform(k4, (c,), jnp.float32, 0.5, 1.5)
    return gamma, beta, mean, var


def init_raw_params(key, inplanes, planes):
    ks = jax.random.split(key, 6)
    return {
        "w1": jax.random.normal(ks[0], (planes, inplanes, 1, 1), jnp.float32) * 0.1,
        "w2": jax.random.normal(ks[1], (planes, planes, 3, 3), jnp.float32) * 0.1,
        "w3": jax.random.normal(ks[2], (planes * 4, planes, 1, 1), jnp.float32) * 0.1,
        "bn1": _init_bn(ks[3], planes),
        "bn2": _init_bn(ks[4], planes),
        "bn3": _init_bn(ks[5], planes * 4),
    }


# ----------------------------- plain-JAX reference -----------------------------

def reference_forward(x_nchw, raw, stride=1, dilation=1):
    def conv(x, w, s, p, d):
        return jax.lax.conv_general_dilated(
            x, w, window_strides=(s, s), padding=((p, p), (p, p)),
            rhs_dilation=(d, d), dimension_numbers=("NCHW", "OIHW", "NCHW"))

    def bn(x, stats):
        gamma, beta, mean, var = stats
        inv = gamma / jnp.sqrt(var + EPS)
        return x * inv[None, :, None, None] + (beta - mean * inv)[None, :, None, None]

    out = jnp.maximum(bn(conv(x_nchw, raw["w1"], stride, 0, 1), raw["bn1"]), 0.0)
    out = jnp.maximum(bn(conv(out, raw["w2"], 1, dilation, dilation), raw["bn2"]), 0.0)
    out = bn(conv(out, raw["w3"], 1, 0, 1), raw["bn3"])
    out = out + x_nchw
    return jnp.maximum(out, 0.0)


# ------------------------------------ main -------------------------------------

if __name__ == "__main__":
    key = jax.random.PRNGKey(0)
    k_x, k_p = jax.random.split(key)

    # inplanes == planes*4 so the identity residual (downsample=None) is valid.
    inplanes, planes = 64, 16
    N, H, W = 2, 16, 16
    dilation = 2

    raw = init_raw_params(k_p, inplanes, planes)
    x = jax.random.normal(k_x, (N, inplanes, H, W), jnp.float32)   # NCHW as in PyTorch

    ref = reference_forward(x, raw, dilation=dilation)

    # 1) f32 weights / f32 I/O, auto tiling (whole image), stacked-tap conv2.
    p_f32 = prepare_params(raw, compute_dtype=jnp.float32)
    out = jax.block_until_ready(bottleneck_forward(x, p_f32, dilation=dilation))
    np.testing.assert_allclose(np.asarray(out), np.asarray(ref),
                               rtol=2e-4, atol=2e-4)

    # 2) f32, explicit H-tiling (2 tiles of 8 rows -> halo path), 9-matmul conv2.
    out = jax.block_until_ready(
        bottleneck_forward(x, p_f32, dilation=dilation, tile_rows=8,
                           stack_taps=False))
    np.testing.assert_allclose(np.asarray(out), np.asarray(ref),
                               rtol=2e-4, atol=2e-4)

    # 3) f32, H-tiling + stacked taps.
    out = jax.block_until_ready(
        bottleneck_forward(x, p_f32, dilation=dilation, tile_rows=8,
                           stack_taps=True))
    np.testing.assert_allclose(np.asarray(out), np.asarray(ref),
                               rtol=2e-4, atol=2e-4)

    # 4) Recommended perf config: bf16 weights + bf16 activation I/O, H-tiled.
    p_bf16 = prepare_params(raw, compute_dtype=jnp.bfloat16)
    out = jax.block_until_ready(
        bottleneck_forward(x, p_bf16, dilation=dilation, tile_rows=8,
                           io_dtype=jnp.bfloat16))
    np.testing.assert_allclose(np.asarray(out.astype(jnp.float32)),
                               np.asarray(ref), rtol=8e-2, atol=8e-2)

    print("KERNEL_OK")
</pallas_src>

<mosaic_0001>
module attributes {stable_mosaic.version = 11 : i64} {
  func.func @_bottleneck_kernel(%arg0: i32, %arg1: i32, %arg2: memref<1x64x256xf32, #tpu.memory_space<vmem>>, %arg3: memref<1x1x64x64xf32, #tpu.memory_space<vmem>>, %arg4: memref<16x64xf32, #tpu.memory_space<vmem>>, %arg5: memref<16x1xf32, #tpu.memory_space<vmem>>, %arg6: memref<16x144xf32, #tpu.memory_space<vmem>>, %arg7: memref<16x1xf32, #tpu.memory_space<vmem>>, %arg8: memref<64x16xf32, #tpu.memory_space<vmem>>, %arg9: memref<64x1xf32, #tpu.memory_space<vmem>>, %arg10: memref<1x64x256xf32, #tpu.memory_space<vmem>>, %arg11: memref<16x512xf32, #tpu.memory_space<vmem>>) attributes {dimension_semantics = [#tpu.dimension_semantics<parallel>, #tpu.dimension_semantics<parallel>], iteration_bounds = array<i64: 2, 1>, scalar_prefetch = 0 : i64, scratch_operands = 1 : i64, tpu.core_type = #tpu.core_type<tc>, window_params = [{transform_indices = @transform_0, window_bounds = array<i64: 1, 64, 256>}, {transform_indices = @transform_1, window_bounds = array<i64: 1, 1, 64, 64>}, {pipeline_mode = #tpu.pipeline_mode<synchronous>, transform_indices = @transform_2, window_bounds = array<i64: 16, 64>}, {pipeline_mode = #tpu.pipeline_mode<synchronous>, transform_indices = @transform_3, window_bounds = array<i64: 16, 1>}, {pipeline_mode = #tpu.pipeline_mode<synchronous>, transform_indices = @transform_4, window_bounds = array<i64: 16, 144>}, {pipeline_mode = #tpu.pipeline_mode<synchronous>, transform_indices = @transform_5, window_bounds = array<i64: 16, 1>}, {pipeline_mode = #tpu.pipeline_mode<synchronous>, transform_indices = @transform_6, window_bounds = array<i64: 64, 16>}, {pipeline_mode = #tpu.pipeline_mode<synchronous>, transform_indices = @transform_7, window_bounds = array<i64: 64, 1>}, {transform_indices = @transform_8, window_bounds = array<i64: 1, 64, 256>}]} {
    %c0 = arith.constant 0 : index
    %c0_0 = arith.constant 0 : index
    %c0_1 = arith.constant 0 : index
    %0 = vector.load %arg2[%c0, %c0_0, %c0_1] : memref<1x64x256xf32, #tpu.memory_space<vmem>>, vector<1x64x256xf32>
    %1 = vector.shape_cast %0 : vector<1x64x256xf32> to vector<64x256xf32>
    %c0_2 = arith.constant 0 : index
    %c0_3 = arith.constant 0 : index
    %2 = vector.load %arg4[%c0_2, %c0_3] : memref<16x64xf32, #tpu.memory_space<vmem>>, vector<16x64xf32>
    %cst = arith.constant dense<0.000000e+00> : vector<16x256xf32>
    %3 = tpu.matmul %2, %1, %cst {dimension_numbers = #tpu.dot_dimension_numbers<[1], [0], [0], [1], [0, 0, 1, 1], [], []>} : vector<16x64xf32>, vector<64x256xf32>, vector<16x256xf32> -> vector<16x256xf32>
    %c0_4 = arith.constant 0 : index
    %c0_5 = arith.constant 0 : index
    %4 = vector.load %arg5[%c0_4, %c0_5] : memref<16x1xf32, #tpu.memory_space<vmem>>, vector<16x1xf32>
    %5 = vector.broadcast %4 : vector<16x1xf32> to vector<16x256xf32>
    %6 = arith.addf %3, %5 : vector<16x256xf32>
    %cst_6 = arith.constant 0.000000e+00 : f32
    %7 = vector.broadcast %cst_6 : f32 to vector<16x256xf32>
    %8 = arith.maximumf %6, %7 : vector<16x256xf32>
    %c0_7 = arith.constant 0 : index
    %c0_8 = arith.constant 0 : index
    %c0_9 = arith.constant 0 : index
    %c0_10 = arith.constant 0 : index
    %9 = vector.load %arg3[%c0_7, %c0_8, %c0_9, %c0_10] : memref<1x1x64x64xf32, #tpu.memory_space<vmem>>, vector<1x1x64x64xf32>
    %10 = vector.shape_cast %9 : vector<1x1x64x64xf32> to vector<64x64xf32>
    %cst_11 = arith.constant dense<0.000000e+00> : vector<16x64xf32>
    %11 = tpu.matmul %2, %10, %cst_11 {dimension_numbers = #tpu.dot_dimension_numbers<[1], [0], [0], [1], [0, 0, 1, 1], [], []>} : vector<16x64xf32>, vector<64x64xf32>, vector<16x64xf32> -> vector<16x64xf32>
    %c0_12 = arith.constant 0 : index
    %c0_13 = arith.constant 0 : index
    %12 = vector.load %arg5[%c0_12, %c0_13] : memref<16x1xf32, #tpu.memory_space<vmem>>, vector<16x1xf32>
    %13 = vector.broadcast %12 : vector<16x1xf32> to vector<16x64xf32>
    %14 = arith.addf %11, %13 : vector<16x64xf32>
    %cst_14 = arith.constant 0.000000e+00 : f32
    %15 = vector.broadcast %cst_14 : f32 to vector<16x64xf32>
    %16 = arith.maximumf %14, %15 : vector<16x64xf32>
    %c0_i32 = arith.constant 0 : i32
    %17 = arith.cmpi sgt, %arg1, %c0_i32 : i32
    %18 = arith.extui %17 : i1 to i32
    %19 = arith.sitofp %18 : i32 to f32
    %c0_i32_15 = arith.constant 0 : i32
    %20 = arith.cmpi slt, %arg1, %c0_i32_15 : i32
    %21 = arith.extui %20 : i1 to i32
    %22 = arith.sitofp %21 : i32 to f32
    %cst_16 = arith.constant 0.000000e+00 : f32
    %23 = vector.broadcast %cst_16 : f32 to vector<16x96xf32>
    %c0_17 = arith.constant 0 : index
    %c0_18 = arith.constant 0 : index
    %24 = vector.load %arg11[%c0_17, %c0_18] : memref<16x512xf32, #tpu.memory_space<vmem>>, vector<16x96xf32>
    tpu.vector_store %arg11[%c0_17, %c0_18], %23 {strides = array<i32>} : memref<16x512xf32, #tpu.memory_space<vmem>>, vector<16x96xf32>,
    %25 = vector.extract_strided_slice %16 {offsets = [0, 0], sizes = [16, 32], strides = [1, 1]} : vector<16x64xf32> to vector<16x32xf32>
    %26 = vector.broadcast %19 : f32 to vector<16x32xf32>
    %27 = arith.mulf %25, %26 : vector<16x32xf32>
    %c0_19 = arith.constant 0 : index
    %c96 = arith.constant 96 : index
    %28 = vector.load %arg11[%c0_19, %c96] : memref<16x512xf32, #tpu.memory_space<vmem>>, vector<16x32xf32>
    tpu.vector_store %arg11[%c0_19, %c96], %27 {strides = array<i32>} : memref<16x512xf32, #tpu.memory_space<vmem>>, vector<16x32xf32>,
    %c0_20 = arith.constant 0 : index
    %c128 = arith.constant 128 : index
    %29 = vector.load %arg11[%c0_20, %c128] : memref<16x512xf32, #tpu.memory_space<vmem>>, vector<16x256xf32>
    tpu.vector_store %arg11[%c0_20, %c128], %8 {strides = array<i32>} : memref<16x512xf32, #tpu.memory_space<vmem>>, vector<16x256xf32>,
    %30 = vector.extract_strided_slice %16 {offsets = [0, 32], sizes = [16, 32], strides = [1, 1]} : vector<16x64xf32> to vector<16x32xf32>
    %31 = vector.broadcast %22 : f32 to vector<16x32xf32>
    %32 = arith.mulf %30, %31 : vector<16x32xf32>
    %c0_21 = arith.constant 0 : index
    %c384 = arith.constant 384 : index
    %33 = vector.load %arg11[%c0_21, %c384] : memref<16x512xf32, #tpu.memory_space<vmem>>, vector<16x32xf32>
    tpu.vector_store %arg11[%c0_21, %c384], %32 {strides = array<i32>} : memref<16x512xf32, #tpu.memory_space<vmem>>, vector<16x32xf32>,
    %cst_22 = arith.constant 0.000000e+00 : f32
    %34 = vector.broadcast %cst_22 : f32 to vector<16x96xf32>
    %c0_23 = arith.constant 0 : index
    %c416 = arith.constant 416 : index
    %35 = vector.load %arg11[%c0_23, %c416] : memref<16x512xf32, #tpu.memory_space<vmem>>, vector<16x96xf32>
    tpu.vector_store %arg11[%c0_23, %c416], %34 {strides = array<i32>} : memref<16x512xf32, #tpu.memory_space<vmem>>, vector<16x96xf32>,
    %36 = tpu.iota {dimensions = array<i32: 1>} : vector<1x256xi32>
    %c16_i32 = arith.constant 16 : i32
    %c0_i32_24 = arith.constant 0 : i32
    %37 = arith.cmpi eq, %c16_i32, %c0_i32_24 : i32
    %c1_i32 = arith.constant 1 : i32
    %38 = arith.select %37, %c1_i32, %c16_i32 : i32
    %39 = vector.broadcast %38 : i32 to vector<1x256xi32>
    %40 = arith.remsi %36, %39 : vector<1x256xi32>
    %c0_i32_25 = arith.constant 0 : i32
    %41 = vector.broadcast %c0_i32_25 : i32 to vector<1x256xi32>
    %42 = arith.cmpi ne, %40, %41 : vector<1x256xi32>
    %c0_i32_26 = arith.constant 0 : i32
    %43 = vector.broadcast %c0_i32_26 : i32 to vector<1x256xi32>
    %44 = arith.cmpi slt, %40, %43 : vector<1x256xi32>
    %c0_i32_27 = arith.constant 0 : i32
    %45 = arith.cmpi slt, %38, %c0_i32_27 : i32
    %46 = vector.broadcast %45 : i1 to vector<1x256xi1>
    %47 = vector.broadcast %46 : vector<1x256xi1> to vector<1x256xi1>
    %48 = arith.xori %44, %47 : vector<1x256xi1>
    %49 = arith.andi %48, %42 : vector<1x256xi1>
    %50 = vector.broadcast %38 : i32 to vector<1x256xi32>
    %51 = arith.addi %40, %50 : vector<1x256xi32>
    %52 = arith.select %49, %51, %40 : vector<1x256xi1>, vector<1x256xi32>
    %c2_i32 = arith.constant 2 : i32
    %53 = vector.broadcast %c2_i32 : i32 to vector<1x256xi32>
    %54 = arith.cmpi sge, %52, %53 : vector<1x256xi32>
    %c14_i32 = arith.constant 14 : i32
    %55 = vector.broadcast %c14_i32 : i32 to vector<1x256xi32>
    %56 = arith.cmpi slt, %52, %55 : vector<1x256xi32>
    %c0_28 = arith.constant 0 : index
    %c94 = arith.constant 94 : index
    %57 = vector.load %arg11[%c0_28, %c94] : memref<16x512xf32, #tpu.memory_space<vmem>>, vector<16x256xf32>
    %cst_29 = arith.constant 0.000000e+00 : f32
    %58 = vector.broadcast %cst_29 : f32 to vector<16x256xf32>
    %59 = vector.shape_cast %54 : vector<1x256xi1> to vector<1x256xi1>
    %60 = vector.broadcast %59 : vector<1x256xi1> to vector<16x256xi1>
    %61 = arith.select %60, %57, %58 : vector<16x256xi1>, vector<16x256xf32>
    %c0_30 = arith.constant 0 : index
    %c96_31 = arith.constant 96 : index
    %62 = vector.load %arg11[%c0_30, %c96_31] : memref<16x512xf32, #tpu.memory_space<vmem>>, vector<16x256xf32>
    %c0_32 = arith.constant 0 : index
    %c98 = arith.constant 98 : index
    %63 = vector.load %arg11[%c0_32, %c98] : memref<16x512xf32, #tpu.memory_space<vmem>>, vector<16x256xf32>
    %cst_33 = arith.constant 0.000000e+00 : f32
    %64 = vector.broadcast %cst_33 : f32 to vector<16x256xf32>
    %65 = vector.shape_cast %56 : vector<1x256xi1> to vector<1x256xi1>
    %66 = vector.broadcast %65 : vector<1x256xi1> to vector<16x256xi1>
    %67 = arith.select %66, %63, %64 : vector<16x256xi1>, vector<16x256xf32>
    %c0_34 = arith.constant 0 : index
    %c126 = arith.constant 126 : index
    %68 = vector.load %arg11[%c0_34, %c126] : memref<16x512xf32, #tpu.memory_space<vmem>>, vector<16x256xf32>
    %cst_35 = arith.constant 0.000000e+00 : f32
    %69 = vector.broadcast %cst_35 : f32 to vector<16x256xf32>
    %70 = vector.shape_cast %54 : vector<1x256xi1> to vector<1x256xi1>
    %71 = vector.broadcast %70 : vector<1x256xi1> to vector<16x256xi1>
    %72 = arith.select %71, %68, %69 : vector<16x256xi1>, vector<16x256xf32>
    %c0_36 = arith.constant 0 : index
    %c128_37 = arith.constant 128 : index
    %73 = vector.load %arg11[%c0_36, %c128_37] : memref<16x512xf32, #tpu.memory_space<vmem>>, vector<16x256xf32>
    %c0_38 = arith.constant 0 : index
    %c130 = arith.constant 130 : index
    %74 = vector.load %arg11[%c0_38, %c130] : memref<16x512xf32, #tpu.memory_space<vmem>>, vector<16x256xf32>
    %cst_39 = arith.constant 0.000000e+00 : f32
    %75 = vector.broadcast %cst_39 : f32 to vector<16x256xf32>
    %76 = vector.shape_cast %56 : vector<1x256xi1> to vector<1x256xi1>
    %77 = vector.broadcast %76 : vector<1x256xi1> to vector<16x256xi1>
    %78 = arith.select %77, %74, %75 : vector<16x256xi1>, vector<16x256xf32>
    %c0_40 = arith.constant 0 : index
    %c158 = arith.constant 158 : index
    %79 = vector.load %arg11[%c0_40, %c158] : memref<16x512xf32, #tpu.memory_space<vmem>>, vector<16x256xf32>
    %cst_41 = arith.constant 0.000000e+00 : f32
    %80 = vector.broadcast %cst_41 : f32 to vector<16x256xf32>
    %81 = vector.shape_cast %54 : vector<1x256xi1> to vector<1x256xi1>
    %82 = vector.broadcast %81 : vector<1x256xi1> to vector<16x256xi1>
    %83 = arith.select %82, %79, %80 : vector<16x256xi1>, vector<16x256xf32>
    %c0_42 = arith.constant 0 : index
    %c160 = arith.constant 160 : index
    %84 = vector.load %arg11[%c0_42, %c160] : memref<16x512xf32, #tpu.memory_space<vmem>>, vector<16x256xf32>
    %c0_43 = arith.constant 0 : index
    %c162 = arith.constant 162 : index
    %85 = vector.load %arg11[%c0_43, %c162] : memref<16x512xf32, #tpu.memory_space<vmem>>, vector<16x256xf32>
    %cst_44 = arith.constant 0.000000e+00 : f32
    %86 = vector.broadcast %cst_44 : f32 to vector<16x256xf32>
    %87 = vector.shape_cast %56 : vector<1x256xi1> to vector<1x256xi1>
    %88 = vector.broadcast %87 : vector<1x256xi1> to vector<16x256xi1>
    %89 = arith.select %88, %85, %86 : vector<16x256xi1>, vector<16x256xf32>
    %90 = tpu.concatenate %61, %62, %67, %72, %73, %78, %83, %84, %89 in 0 : vector<16x256xf32>, vector<16x256xf32>, vector<16x256xf32>, vector<16x256xf32>, vector<16x256xf32>, vector<16x256xf32>, vector<16x256xf32>, vector<16x256xf32>, vector<16x256xf32> -> vector<144x256xf32>
    %c0_45 = arith.constant 0 : index
    %c0_46 = arith.constant 0 : index
    %91 = vector.load %arg6[%c0_45, %c0_46] : memref<16x144xf32, #tpu.memory_space<vmem>>, vector<16x144xf32>
    %cst_47 = arith.constant dense<0.000000e+00> : vector<16x256xf32>
    %92 = tpu.matmul %91, %90, %cst_47 {dimension_numbers = #tpu.dot_dimension_numbers<[1], [0], [0], [1], [0, 0, 1, 1], [], []>} : vector<16x144xf32>, vector<144x256xf32>, vector<16x256xf32> -> vector<16x256xf32>
    %c0_48 = arith.constant 0 : index
    %c0_49 = arith.constant 0 : index
    %93 = vector.load %arg7[%c0_48, %c0_49] : memref<16x1xf32, #tpu.memory_space<vmem>>, vector<16x1xf32>
    %94 = vector.broadcast %93 : vector<16x1xf32> to vector<16x256xf32>
    %95 = arith.addf %92, %94 : vector<16x256xf32>
    %cst_50 = arith.constant 0.000000e+00 : f32
    %96 = vector.broadcast %cst_50 : f32 to vector<16x256xf32>
    %97 = arith.maximumf %95, %96 : vector<16x256xf32>
    %c0_51 = arith.constant 0 : index
    %c0_52 = arith.constant 0 : index
    %98 = vector.load %arg8[%c0_51, %c0_52] : memref<64x16xf32, #tpu.memory_space<vmem>>, vector<64x16xf32>
    %cst_53 = arith.constant dense<0.000000e+00> : vector<64x256xf32>
    %99 = tpu.matmul %98, %97, %cst_53 {dimension_numbers = #tpu.dot_dimension_numbers<[1], [0], [0], [1], [0, 0, 1, 1], [], []>} : vector<64x16xf32>, vector<16x256xf32>, vector<64x256xf32> -> vector<64x256xf32>
    %c0_54 = arith.constant 0 : index
    %c0_55 = arith.constant 0 : index
    %100 = vector.load %arg9[%c0_54, %c0_55] : memref<64x1xf32, #tpu.memory_space<vmem>>, vector<64x1xf32>
    %101 = vector.broadcast %100 : vector<64x1xf32> to vector<64x256xf32>
    %102 = arith.addf %99, %101 : vector<64x256xf32>
    %103 = arith.addf %102, %1 : vector<64x256xf32>
    %cst_56 = arith.constant 0.000000e+00 : f32
    %104 = vector.broadcast %cst_56 : f32 to vector<64x256xf32>
    %105 = arith.maximumf %103, %104 : vector<64x256xf32>
    %c0_57 = arith.constant 0 : index
    %c0_58 = arith.constant 0 : index
    %c0_59 = arith.constant 0 : index
    %106 = vector.load %arg10[%c0_57, %c0_58, %c0_59] : memref<1x64x256xf32, #tpu.memory_space<vmem>>, vector<1x64x256xf32>
    %107 = vector.shape_cast %106 : vector<1x64x256xf32> to vector<64x256xf32>
    %108 = vector.shape_cast %105 : vector<64x256xf32> to vector<1x64x256xf32>
    tpu.vector_store %arg10[%c0_57, %c0_58, %c0_59], %108 {strides = array<i32>} : memref<1x64x256xf32, #tpu.memory_space<vmem>>, vector<1x64x256xf32>,
    return
  }
  func.func @transform_0(%arg0: i32, %arg1: i32) -> (i32, i32, i32) {
    %c0_i32 = arith.constant 0 : i32
    %c0_i32_0 = arith.constant 0 : i32
    return %arg0, %c0_i32, %arg1 : i32, i32, i32
  }
  func.func @transform_1(%arg0: i32, %arg1: i32) -> (i32, i32, i32, i32) {
    %c0_i32 = arith.constant 0 : i32
    %c0_i32_0 = arith.constant 0 : i32
    %c0_i32_1 = arith.constant 0 : i32
    return %arg0, %arg1, %c0_i32, %c0_i32_0 : i32, i32, i32, i32
  }
  func.func @transform_2(%arg0: i32, %arg1: i32) -> (i32, i32) {
    %c0_i32 = arith.constant 0 : i32
    %c0_i32_0 = arith.constant 0 : i32
    %c0_i32_1 = arith.constant 0 : i32
    return %c0_i32, %c0_i32_0 : i32, i32
  }
  func.func @transform_3(%arg0: i32, %arg1: i32) -> (i32, i32) {
    %c0_i32 = arith.constant 0 : i32
    %c0_i32_0 = arith.constant 0 : i32
    %c0_i32_1 = arith.constant 0 : i32
    return %c0_i32, %c0_i32_0 : i32, i32
  }
  func.func @transform_4(%arg0: i32, %arg1: i32) -> (i32, i32) {
    %c0_i32 = arith.constant 0 : i32
    %c0_i32_0 = arith.constant 0 : i32
    %c0_i32_1 = arith.constant 0 : i32
    return %c0_i32, %c0_i32_0 : i32, i32
  }
  func.func @transform_5(%arg0: i32, %arg1: i32) -> (i32, i32) {
    %c0_i32 = arith.constant 0 : i32
    %c0_i32_0 = arith.constant 0 : i32
    %c0_i32_1 = arith.constant 0 : i32
    return %c0_i32, %c0_i32_0 : i32, i32
  }
  func.func @transform_6(%arg0: i32, %arg1: i32) -> (i32, i32) {
    %c0_i32 = arith.constant 0 : i32
    %c0_i32_0 = arith.constant 0 : i32
    %c0_i32_1 = arith.constant 0 : i32
    return %c0_i32, %c0_i32_0 : i32, i32
  }
  func.func @transform_7(%arg0: i32, %arg1: i32) -> (i32, i32) {
    %c0_i32 = arith.constant 0 : i32
    %c0_i32_0 = arith.constant 0 : i32
    %c0_i32_1 = arith.constant 0 : i32
    return %c0_i32, %c0_i32_0 : i32, i32
  }
  func.func @transform_8(%arg0: i32, %arg1: i32) -> (i32, i32, i32) {
    %c0_i32 = arith.constant 0 : i32
    %c0_i32_0 = arith.constant 0 : i32
    return %arg0, %c0_i32, %arg1 : i32, i32, i32
  }
}

</mosaic_0001>

<llo_original>
// kernel: tpu_custom_call.1
$region0: #{tpu_custom_call.1}
  #allocation0 [shape = 'u32[]', space=smem, size = 0x4, offset = 0x4, fixed_abs, tag = 'smem constant byte address 0x4 - core index']
  #allocation1 [shape = 'u32[144,128]{1,0:T(1,128)}', space=vmem, size = 0x12000, scoped, tag = 'internal scratch']
  #allocation2 [shape = 'f32[16,512]{1,0:T(8,128)}', space=vmem, size = 0x8000, scoped, tag = 'scratch operand']
  %s0 = inlined_call_operand.hbm [shape: f32[2,64,256], index: 0, kind: input, shape index: {}]
  %s1 = inlined_call_operand.vmem [shape: f32[2,1,64,64], index: 1, kind: input, shape index: {}]
  %s2 = inlined_call_operand.hbm [shape: f32[16,64], index: 2, kind: input, shape index: {}]
  %s3 = inlined_call_operand.vmem [shape: f32[16,1], index: 3, kind: input, shape index: {}]
  %s4 = inlined_call_operand.vmem [shape: f32[16,144], index: 4, kind: input, shape index: {}]
  %s5 = inlined_call_operand.vmem [shape: f32[16,1], index: 5, kind: input, shape index: {}]
  %s6 = inlined_call_operand.vmem [shape: f32[64,16], index: 6, kind: input, shape index: {}]
  %s7 = inlined_call_operand.vmem [shape: f32[64,1], index: 7, kind: input, shape index: {}]
  %s8 = inlined_call_operand.hbm [shape: f32[2,64,256], index: 8, kind: output, shape index: {}]
  %s9 = sld [smem:[#allocation0]]
  $region73: #{tpu_custom_call.1} parent=0
    _
  %s11 = ssub.s32 1, %s9
  %s12 = scalar_select 0, %s11, %s9
  $region1: #{tpu_custom_call.1} parent=0
    #allocation3 [shape = 'u8[131072]{0}', space=vmem, size = 0x20000, scoped, tag = 'input window, operand 0']
    #allocation4 [shape = 's32[2]{0}', space=sflag, size = 0x8, scoped, tag = 'scoped memory for tpu_custom_call.1']
    #allocation5 [shape = 's32[2]{0}', space=sflag, size = 0x8, scoped, tag = 'scoped memory for tpu_custom_call.1']
    #allocation6 [shape = 'u8[8192]{0}', space=vmem, size = 0x2000, scoped, tag = 'input window, operand 2, single buffered']
    #allocation7 [shape = 's32[1]{0}', space=sflag, size = 0x4, scoped, tag = 'scoped memory for tpu_custom_call.1']
    #allocation8 [shape = 'u8[131072]{0}', space=vmem, size = 0x20000, scoped, tag = 'output window, operand 0']
    %13 = vsyncpa [#allocation4], 0
    %s14 = scalar_lea.sflag [#allocation4], 1
    %15 = vsyncpa %s14, 0
    %16 = vsyncpa [#allocation7], 0
    %17 = vsyncpa [#allocation5], 0
    %s18 = scalar_lea.sflag [#allocation5], 1
    %19 = vsyncpa %s18, 0
    loop: start=0, step=1, limit=4
    $region2: #{tpu_custom_call.1} parent=1 // loop_pre_header
      _
    $region3: #{tpu_custom_call.1} parent=1 // loop_header
      %s21 = sphi 0, %s25
      %p22 = scmp.ge.s32.totalorder %s21, 4
      %s28 = sphi 0, %s40
      %s29 = sphi 0, %s36
      %s30 = sphi 0, %s28
      %s31 = sphi 0, %s29
      %s32 = sphi 0, %s30
      %s33 = sphi 0, %s31
      %s45 = sphi 0, %s47
      %s48 = sphi 0, %s45
      %s49 = sphi 0, %s48
      %s65 = sphi 0, %s49
      %s73 = sphi 0, %s75
      %s76 = sphi 0, %s73
      %s77 = sphi 0, %s76
      %s93 = sphi 0, %s77
      %s97 = sphi 0, %s97
      %s99 = sphi 0, %s97
      %s100 = sphi 0, %s99
      %s114 = sphi 0, %s100
      %s118 = sphi 0, %s118
      %s120 = sphi 0, %s118
      %s121 = sphi 0, %s120
      %s135 = sphi 0, %s121
      %s139 = sphi 0, %s139
      %s141 = sphi 0, %s139
      %s142 = sphi 0, %s141
      %s156 = sphi 0, %s142
      %s160 = sphi 0, %s160
      %s162 = sphi 0, %s160
      %s163 = sphi 0, %s162
      %s177 = sphi 0, %s163
      %s181 = sphi 0, %s181
      %s183 = sphi 0, %s181
      %s184 = sphi 0, %s183
      %s198 = sphi 0, %s184
      %s202 = sphi 0, %s202
      %s204 = sphi 0, %s202
      %s205 = sphi 0, %s204
      %s219 = sphi 0, %s205
      %s227 = sphi 0, %s229
      %s230 = sphi 0, %s227
      %s231 = sphi 0, %s230
      %s247 = sphi 0, %s231
    $region4: #{tpu_custom_call.1} parent=1 // loop_header_branch
      %24 = sbr.rel (%p22) target = $region8
    $region5: #{tpu_custom_call.1} parent=1 // loop_body
      %s26 = ssub.s32 %s21, 1
      %s27 = ssub.s32 %s21, 2
      %s34 = sadd.s32 1, %s29
      %p35 = scmp.ge.s32.totalorder %s34, 1
      %s36 = scalar_select %p35, 0, %s34
      %s37 = sadd.s32 1, %s28
      %s38 = scalar_select %p35, %s37, %s28
      %p39 = scmp.ge.s32.totalorder %s38, 2
      %s40 = scalar_select %p39, 0, %s38
      %s41 = ssub.s32 %s28, %s40
      %s42 = ssub.s32 %s29, %s36
      %s43 = sor.u32 %s41, %s42
      %p44 = scmp.eq.s32.totalorder %s43, 0
      %s46 = sadd.s32 %s45, 1
      %s47 = scalar_select %p44, %s45, %s46
      %p50 = pneg %p44
      %p51 = scmp.eq.s32.totalorder %s21, 1
      %p52 = por %p50, %p51
      %p53 = scmp.ne.s32.totalorder %s45, %s48
      %p54 = scmp.eq.s32.totalorder %s21, 0
      %p55 = por %p53, %p54
      %p56 = scmp.ne.s32.totalorder %s45, %s48
      %p57 = scmp.eq.s32.totalorder %s26, 1
      %p58 = por %p56, %p57
      %p59 = scmp.ne.s32.totalorder %s48, %s49
      %p60 = scmp.eq.s32.totalorder %s26, 0
      %p61 = por %p59, %p60
      %p62 = scmp.ne.s32.totalorder %s48, %s49
      %p63 = scmp.eq.s32.totalorder %s27, 1
      %p64 = por %p62, %p63
      %p66 = scmp.ne.s32.totalorder %s49, %s65
      %p67 = scmp.eq.s32.totalorder %s27, 0
      %p68 = por %p66, %p67
      %s69 = ssub.s32 %s28, %s40
      %s70 = ssub.s32 %s29, %s36
      %s71 = sor.u32 %s69, %s70
      %p72 = scmp.eq.s32.totalorder %s71, 0
      %s74 = sadd.s32 %s73, 1
      %s75 = scalar_select %p72, %s73, %s74
      %p78 = pneg %p72
      %p79 = scmp.eq.s32.totalorder %s21, 1
      %p80 = por %p78, %p79
      %p81 = scmp.ne.s32.totalorder %s73, %s76
      %p82 = scmp.eq.s32.totalorder %s21, 0
      %p83 = por %p81, %p82
      %p84 = scmp.ne.s32.totalorder %s73, %s76
      %p85 = scmp.eq.s32.totalorder %s26, 1
      %p86 = por %p84, %p85
      %p87 = scmp.ne.s32.totalorder %s76, %s77
      %p88 = scmp.eq.s32.totalorder %s26, 0
      %p89 = por %p87, %p88
      %p90 = scmp.ne.s32.totalorder %s76, %s77
      %p91 = scmp.eq.s32.totalorder %s27, 1
      %p92 = por %p90, %p91
      %p94 = scmp.ne.s32.totalorder %s77, %s93
      %p95 = scmp.eq.s32.totalorder %s27, 0
      %p96 = por %p94, %p95
      %s98 = sadd.s32 %s97, 1
      %p101 = scmp.eq.s32.totalorder %s21, 1
      %p102 = scmp.ne.s32.totalorder %s97, %s99
      %p103 = scmp.eq.s32.totalorder %s21, 0
      %p104 = por %p102, %p103
      %p105 = scmp.ne.s32.totalorder %s97, %s99
      %p106 = scmp.eq.s32.totalorder %s26, 1
      %p107 = por %p105, %p106
      %p108 = scmp.ne.s32.totalorder %s99, %s100
      %p109 = scmp.eq.s32.totalorder %s26, 0
      %p110 = por %p108, %p109
      %p111 = scmp.ne.s32.totalorder %s99, %s100
      %p112 = scmp.eq.s32.totalorder %s27, 1
      %p113 = por %p111, %p112
      %p115 = scmp.ne.s32.totalorder %s100, %s114
      %p116 = scmp.eq.s32.totalorder %s27, 0
      %p117 = por %p115, %p116
      %s119 = sadd.s32 %s118, 1
      %p122 = scmp.eq.s32.totalorder %s21, 1
      %p123 = scmp.ne.s32.totalorder %s118, %s120
      %p124 = scmp.eq.s32.totalorder %s21, 0
      %p125 = por %p123, %p124
      %p126 = scmp.ne.s32.totalorder %s118, %s120
      %p127 = scmp.eq.s32.totalorder %s26, 1
      %p128 = por %p126, %p127
      %p129 = scmp.ne.s32.totalorder %s120, %s121
      %p130 = scmp.eq.s32.totalorder %s26, 0
      %p131 = por %p129, %p130
      %p132 = scmp.ne.s32.totalorder %s120, %s121
      %p133 = scmp.eq.s32.totalorder %s27, 1
      %p134 = por %p132, %p133
      %p136 = scmp.ne.s32.totalorder %s121, %s135
      %p137 = scmp.eq.s32.totalorder %s27, 0
      %p138 = por %p136, %p137
      %s140 = sadd.s32 %s139, 1
      %p143 = scmp.eq.s32.totalorder %s21, 1
      %p144 = scmp.ne.s32.totalorder %s139, %s141
      %p145 = scmp.eq.s32.totalorder %s21, 0
      %p146 = por %p144, %p145
      %p147 = scmp.ne.s32.totalorder %s139, %s141
      %p148 = scmp.eq.s32.totalorder %s26, 1
      %p149 = por %p147, %p148
      %p150 = scmp.ne.s32.totalorder %s141, %s142
      %p151 = scmp.eq.s32.totalorder %s26, 0
      %p152 = por %p150, %p151
      %p153 = scmp.ne.s32.totalorder %s141, %s142
      %p154 = scmp.eq.s32.totalorder %s27, 1
      %p155 = por %p153, %p154
      %p157 = scmp.ne.s32.totalorder %s142, %s156
      %p158 = scmp.eq.s32.totalorder %s27, 0
      %p159 = por %p157, %p158
      %s161 = sadd.s32 %s160, 1
      %p164 = scmp.eq.s32.totalorder %s21, 1
      %p165 = scmp.ne.s32.totalorder %s160, %s162
      %p166 = scmp.eq.s32.totalorder %s21, 0
      %p167 = por %p165, %p166
      %p168 = scmp.ne.s32.totalorder %s160, %s162
      %p169 = scmp.eq.s32.totalorder %s26, 1
      %p170 = por %p168, %p169
      %p171 = scmp.ne.s32.totalorder %s162, %s163
      %p172 = scmp.eq.s32.totalorder %s26, 0
      %p173 = por %p171, %p172
      %p174 = scmp.ne.s32.totalorder %s162, %s163
      %p175 = scmp.eq.s32.totalorder %s27, 1
      %p176 = por %p174, %p175
      %p178 = scmp.ne.s32.totalorder %s163, %s177
      %p179 = scmp.eq.s32.totalorder %s27, 0
      %p180 = por %p178, %p179
      %s182 = sadd.s32 %s181, 1
      %p185 = scmp.eq.s32.totalorder %s21, 1
      %p186 = scmp.ne.s32.totalorder %s181, %s183
      %p187 = scmp.eq.s32.totalorder %s21, 0
      %p188 = por %p186, %p187
      %p189 = scmp.ne.s32.totalorder %s181, %s183
      %p190 = scmp.eq.s32.totalorder %s26, 1
      %p191 = por %p189, %p190
      %p192 = scmp.ne.s32.totalorder %s183, %s184
      %p193 = scmp.eq.s32.totalorder %s26, 0
      %p194 = por %p192, %p193
      %p195 = scmp.ne.s32.totalorder %s183, %s184
      %p196 = scmp.eq.s32.totalorder %s27, 1
      %p197 = por %p195, %p196
      %p199 = scmp.ne.s32.totalorder %s184, %s198
      %p200 = scmp.eq.s32.totalorder %s27, 0
      %p201 = por %p199, %p200
      %s203 = sadd.s32 %s202, 1
      %p206 = scmp.eq.s32.totalorder %s21, 1
      %p207 = scmp.ne.s32.totalorder %s202, %s204
      %p208 = scmp.eq.s32.totalorder %s21, 0
      %p209 = por %p207, %p208
      %p210 = scmp.ne.s32.totalorder %s202, %s204
      %p211 = scmp.eq.s32.totalorder %s26, 1
      %p212 = por %p210, %p211
      %p213 = scmp.ne.s32.totalorder %s204, %s205
      %p214 = scmp.eq.s32.totalorder %s26, 0
      %p215 = por %p213, %p214
      %p216 = scmp.ne.s32.totalorder %s204, %s205
      %p217 = scmp.eq.s32.totalorder %s27, 1
      %p218 = por %p216, %p217
      %p220 = scmp.ne.s32.totalorder %s205, %s219
      %p221 = scmp.eq.s32.totalorder %s27, 0
      %p222 = por %p220, %p221
      %s223 = ssub.s32 %s28, %s40
      %s224 = ssub.s32 %s29, %s36
      %s225 = sor.u32 %s223, %s224
      %p226 = scmp.eq.s32.totalorder %s225, 0
      %s228 = sadd.s32 %s227, 1
      %s229 = scalar_select %p226, %s227, %s228
      %p232 = pneg %p226
      %p233 = scmp.eq.s32.totalorder %s21, 1
      %p234 = por %p232, %p233
      %p235 = scmp.ne.s32.totalorder %s227, %s230
      %p236 = scmp.eq.s32.totalorder %s21, 0
      %p237 = por %p235, %p236
      %p238 = scmp.ne.s32.totalorder %s227, %s230
      %p239 = scmp.eq.s32.totalorder %s26, 1
      %p240 = por %p238, %p239
      %p241 = scmp.ne.s32.totalorder %s230, %s231
      %p242 = scmp.eq.s32.totalorder %s26, 0
      %p243 = por %p241, %p242
      %p244 = scmp.ne.s32.totalorder %s230, %s231
      %p245 = scmp.eq.s32.totalorder %s27, 1
      %p246 = por %p244, %p245
      %p248 = scmp.ne.s32.totalorder %s231, %s247
      %p249 = scmp.eq.s32.totalorder %s27, 0
      %p250 = por %p248, %p249
      %p251 = scmp.le.s32.totalorder 1, %s21
      %p252 = scmp.lt.s32.totalorder %s21, 3
      %p253 = pnand %p251, %p252
      %p254 = pneg %p253
      // Predicated region
      $region9: #{tpu_custom_call.1} parent=5 // pred_check
        _
      $region10: #{tpu_custom_call.1} parent=5 // pred_check_branch
        %256 = sbr.rel (%p253) target = $region12
      $region11: #{tpu_custom_call.1} parent=5 // pred_region
        %s257 = ssub.s32 %s21, 1
        // Predicated region
        $region13: #{tpu_custom_call.1} parent=11 // pred_check
          %p258 = pneg %p110
        $region14: #{tpu_custom_call.1} parent=11 // pred_check_branch
          %260 = sbr.rel (%p258) target = $region16
        $region15: #{tpu_custom_call.1} parent=11 // pred_region
          %s262 = ssub.s32 256, 256
          %263 = vsyncadd [#allocation7], %s262
          %s264 = sshll.u32 [#allocation6], 4
          %s265 = int_to_ptr.vmem [resolvable:$true] %s264
          %270 = dma.hbm_to_vmem [thread:$0]  %s2, 256, %s265, [#allocation7], 128, 128, 8
        $region16: #{tpu_custom_call.1} parent=11 // pred_fallthru
          _
        // Predicated region
        $region17: #{tpu_custom_call.1} parent=11 // pred_check
          %p271 = pneg %p131
        $region18: #{tpu_custom_call.1} parent=11 // pred_check_branch
          %273 = sbr.rel (%p271) target = $region20
        $region19: #{tpu_custom_call.1} parent=11 // pred_region
          _
        $region20: #{tpu_custom_call.1} parent=11 // pred_fallthru
          _
        // Predicated region
        $region21: #{tpu_custom_call.1} parent=11 // pred_check
          %p274 = pneg %p152
        $region22: #{tpu_custom_call.1} parent=11 // pred_check_branch
          %276 = sbr.rel (%p274) target = $region24
        $region23: #{tpu_custom_call.1} parent=11 // pred_region
          _
        $region24: #{tpu_custom_call.1} parent=11 // pred_fallthru
          _
        // Predicated region
        $region25: #{tpu_custom_call.1} parent=11 // pred_check
          %p277 = pneg %p173
        $region26: #{tpu_custom_call.1} parent=11 // pred_check_branch
          %279 = sbr.rel (%p277) target = $region28
        $region27: #{tpu_custom_call.1} parent=11 // pred_region
          _
        $region28: #{tpu_custom_call.1} parent=11 // pred_fallthru
          _
        // Predicated region
        $region29: #{tpu_custom_call.1} parent=11 // pred_check
          %p280 = pneg %p194
        $region30: #{tpu_custom_call.1} parent=11 // pred_check_branch
          %282 = sbr.rel (%p280) target = $region32
        $region31: #{tpu_custom_call.1} parent=11 // pred_region
          _
        $region32: #{tpu_custom_call.1} parent=11 // pred_fallthru
          _
        // Predicated region
        $region33: #{tpu_custom_call.1} parent=11 // pred_check
          %p283 = pneg %p215
        $region34: #{tpu_custom_call.1} parent=11 // pred_check_branch
          %285 = sbr.rel (%p283) target = $region36
        $region35: #{tpu_custom_call.1} parent=11 // pred_region
          _
        $region36: #{tpu_custom_call.1} parent=11 // pred_fallthru
          _
      $region12: #{tpu_custom_call.1} parent=5 // pred_fallthru
        _
      %p286 = scmp.lt.s32.totalorder %s21, 2
      // Predicated region
      $region37: #{tpu_custom_call.1} parent=5 // pred_check
        %p287 = pneg %p286
      $region38: #{tpu_custom_call.1} parent=5 // pred_check_branch
        %289 = sbr.rel (%p287) target = $region40
      $region39: #{tpu_custom_call.1} parent=5 // pred_region
        // Predicated region
        $region41: #{tpu_custom_call.1} parent=39 // pred_check
          %p290 = pneg %p55
        $region42: #{tpu_custom_call.1} parent=39 // pred_check_branch
          %292 = sbr.rel (%p290) target = $region44
        $region43: #{tpu_custom_call.1} parent=39 // pred_region
          %s293 = sand.u32 %s45, 1
          %s294 = scalar_lea.sflag [#allocation4], %s293
          %s295 = sand.u32 %s45, 1
          %s296 = smul.addr %s295, 128
          %s297 = scalar_lea.vmem [#allocation3], %s296
          %s298 = smul.u32 2, %s29
          %s300 = ssub.s32 2048, 2048
          %301 = vsyncadd %s294, %s300
          %s302 = smul.addr %s28, 16
          %s303 = sadd.s32 %s298, %s302
          %s304 = smul.addr %s303, 128
          %s305 = scalar_lea.hbm %s0, %s304
          %s306 = sshll.u32 %s297, 4
          %s307 = int_to_ptr.vmem [resolvable:$true] %s306
          %312 = dma.hbm_to_vmem [thread:$0]  %s305, 2048, %s307, %s294, 256, 256, 16
        $region44: #{tpu_custom_call.1} parent=39 // pred_fallthru
          _
        // Predicated region
        $region45: #{tpu_custom_call.1} parent=39 // pred_check
          %p313 = pneg %p83
        $region46: #{tpu_custom_call.1} parent=39 // pred_check_branch
          %315 = sbr.rel (%p313) target = $region48
        $region47: #{tpu_custom_call.1} parent=39 // pred_region
          %p316 = scmp.lt.s32.totalorder %s28, 1
          %s317 = scalar_select %p316, %s28, 1
          %p318 = scmp.lt.s32.totalorder %s29, 0
          %s319 = scalar_select %p318, %s29, 0
          %s320 = smul.addr %s319, 8
          %s321 = smul.addr %s317, 8
          %s322 = sadd.s32 %s320, %s321
          %s323 = smul.addr %s322, 8
          %s324 = scalar_lea.vmem %s1, %s323
        $region48: #{tpu_custom_call.1} parent=39 // pred_fallthru
          _
      $region40: #{tpu_custom_call.1} parent=5 // pred_fallthru
        _
      %p325 = scmp.le.s32.totalorder 1, %s21
      %p326 = scmp.lt.s32.totalorder %s21, 3
      %p327 = pnand %p325, %p326
      %p328 = pneg %p327
      // Predicated region
      $region49: #{tpu_custom_call.1} parent=5 // pred_check
        _
      $region50: #{tpu_custom_call.1} parent=5 // pred_check_branch
        %330 = sbr.rel (%p327) target = $region52
      $region51: #{tpu_custom_call.1} parent=5 // pred_region
        %s331 = ssub.s32 %s21, 1
        %s332 = sand.u32 %s48, 1
        %s333 = scalar_lea.sflag [#allocation4], %s332
        %s334 = sand.u32 %s48, 1
        %s335 = smul.addr %s334, 128
        %s336 = scalar_lea.vmem [#allocation3], %s335
        // Predicated region
        $region53: #{tpu_custom_call.1} parent=51 // pred_check
          %p337 = pneg %p61
        $region54: #{tpu_custom_call.1} parent=51 // pred_check_branch
          %339 = sbr.rel (%p337) target = $region56
        $region55: #{tpu_custom_call.1} parent=51 // pred_region
          %340 = dma.done %s333, 2048
        $region56: #{tpu_custom_call.1} parent=51 // pred_fallthru
          _
        // Predicated region
        $region57: #{tpu_custom_call.1} parent=51 // pred_check
          %p341 = pneg %p110
        $region58: #{tpu_custom_call.1} parent=51 // pred_check_branch
          %343 = sbr.rel (%p341) target = $region60
        $region59: #{tpu_custom_call.1} parent=51 // pred_region
          %344 = dma.done [#allocation7], 256
        $region60: #{tpu_custom_call.1} parent=51 // pred_fallthru
          _
        %s345 = sand.u32 %s48, 1
        %s346 = scalar_lea.sflag [#allocation4], %s345
        %s347 = sand.u32 %s48, 1
        %s348 = smul.addr %s347, 128
        %s349 = scalar_lea.vmem [#allocation3], %s348
        %p350 = pneg %p61
        %p351 = pneg %p58
        %p352 = scmp.lt.s32.totalorder %s30, 1
        %s353 = scalar_select %p352, %s30, 1
        %p354 = scmp.lt.s32.totalorder %s31, 0
        %s355 = scalar_select %p354, %s31, 0
        %s356 = smul.addr %s355, 8
        %s357 = smul.addr %s353, 8
        %s358 = sadd.s32 %s356, %s357
        %s359 = smul.addr %s358, 8
        %s360 = scalar_lea.vmem %s1, %s359
        %p361 = pneg %p89
        %p362 = pneg %p86
        %p363 = pneg %p110
        %p364 = pneg %p107
        %p365 = pneg %p131
        %p366 = pneg %p128
        %p367 = pneg %p152
        %p368 = pneg %p149
        %p369 = pneg %p173
        %p370 = pneg %p170
        %p371 = pneg %p194
        %p372 = pneg %p191
        %p373 = pneg %p215
        %p374 = pneg %p212
        %p375 = pneg %p243
        %p376 = pneg %p240
        %s377 = sand.u32 %s230, 1
        %s378 = scalar_lea.sflag [#allocation5], %s377
        %s379 = sand.u32 %s230, 1
        %s380 = smul.addr %s379, 128
        %s381 = scalar_lea.vmem [#allocation8], %s380
        %s382 = smul.u32 2, %s31
        %p383 = scmp.lt.s32.totalorder %s30, 1
        %s384 = scalar_select %p383, %s30, 1
        %p385 = scmp.lt.s32.totalorder %s31, 0
        %s386 = scalar_select %p385, %s31, 0
        %s387 = smul.addr %s386, 8
        %s388 = smul.addr %s384, 8
        %s389 = sadd.s32 %s387, %s388
        %s390 = smul.addr %s389, 8
        %s391 = scalar_lea.vmem %s1, %s390
        %s392 = smul.u32 2, %s31
        %v393 = vld [vmem:[%s336] sm:$0xff]
        %v394 = vld [vmem:[%s336 + $0x8] sm:$0xff]
        %v395 = vld [vmem:[%s336 + $0x10] sm:$0xff]
        %v396 = vld [vmem:[%s336 + $0x18] sm:$0xff]
        %v397 = vld [vmem:[%s336 + $0x20] sm:$0xff]
        %v398 = vld [vmem:[%s336 + $0x28] sm:$0xff]
        %v399 = vld [vmem:[%s336 + $0x30] sm:$0xff]
        %v400 = vld [vmem:[%s336 + $0x38] sm:$0xff]
        %v401 = vld [vmem:[%s336 + $0x40] sm:$0xff]
        %v402 = vld [vmem:[%s336 + $0x48] sm:$0xff]
        %v403 = vld [vmem:[%s336 + $0x50] sm:$0xff]
        %v404 = vld [vmem:[%s336 + $0x58] sm:$0xff]
        %v405 = vld [vmem:[%s336 + $0x60] sm:$0xff]
        %v406 = vld [vmem:[%s336 + $0x68] sm:$0xff]
        %v407 = vld [vmem:[%s336 + $0x70] sm:$0xff]
        %v408 = vld [vmem:[%s336 + $0x78] sm:$0xff]
        %v409 = vld [vmem:[#allocation6] sm:$0xff]
        %v410 = vld [vmem:[#allocation6 + $0x8] sm:$0xff]
        %v411 = vld [vmem:[%s3] sm:$0xff]
        %v412 = vld [vmem:[%s3 + $0x8] sm:$0xff]
        %414 = vset.pattern.permute.xlu0 0
        %415 = vperm.xlu0 %414, %v411
        %v416 = vpop.permute.xlu0 %415
        %419 = vset.pattern.permute.xlu0 0
        %420 = vperm.xlu0 %419, %v412
        %v421 = vpop.permute.xlu0 %420
        %vm423 = vcmask 523264
        %v425 = vsel %vm423, %v409, 0
        %v428 = vsel %vm423, %v410, 0
        %430 = vmatprep.subr.mxu0 %v394
        %431 = vmatpush1.msra.mxu0 %v393
        %432 = vmatprep.subr.mxu0 %v396
        %433 = vmatpush1.msra.mxu0 %v395
        %434 = vmatprep.subr.mxu0 %v398
        %435 = vmatpush1.msra.mxu0 %v397
        %436 = vmatprep.subr.mxu0 %v400
        %437 = vmatpush1.msra.mxu0 %v399
        %438 = vmatprep.subr.mxu0 %v402
        %439 = vmatpush1.msra.mxu0 %v401
        %440 = vmatprep.subr.mxu0 %v404
        %441 = vmatpush1.msra.mxu0 %v403
        %442 = vmatprep.subr.mxu0 %v406
        %443 = vmatpush1.msra.mxu0 %v405
        %444 = vmatprep.subr.mxu0 %v408
        %445 = vmatpush1.msra.mxu0 %v407
        %446 = vmatprep.subr.mxu0 0.0
        %447 = vmatpush1.msra.mxu0 0.0
        %448 = vmatprep.subr.mxu0 0.0
        %449 = vmatpush1.msra.mxu0 0.0
        %450 = vmatprep.subr.mxu0 0.0
        %451 = vmatpush1.msra.mxu0 0.0
        %452 = vmatprep.subr.mxu0 0.0
        %453 = vmatpush1.msra.mxu0 0.0
        %454 = vmatprep.subr.mxu0 0.0
        %455 = vmatpush1.msra.mxu0 0.0
        %456 = vmatprep.subr.mxu0 0.0
        %457 = vmatpush1.msra.mxu0 0.0
        %458 = vmatprep.subr.mxu0 0.0
        %459 = vmatpush1.msra.mxu0 0.0
        %460 = vmatprep.subr.mxu0 0.0
        %461 = vmatpush1.msra.mxu0 0.0
        %462 = vmatprep.subr.mxu0 0.0
        %463 = vmatpush1.msra.mxu0 0.0
        %464 = vmatprep.subr.mxu0 0.0
        %465 = vmatpush1.msra.mxu0 0.0
        %466 = vmatprep.subr.mxu0 0.0
        %467 = vmatpush1.msra.mxu0 0.0
        %468 = vmatprep.subr.mxu0 0.0
        %469 = vmatpush1.msra.mxu0 0.0
        %470 = vmatprep.subr.mxu0 0.0
        %471 = vmatpush1.msra.mxu0 0.0
        %472 = vmatprep.subr.mxu0 0.0
        %473 = vmatpush1.msra.mxu0 0.0
        %474 = vmatprep.subr.mxu0 0.0
        %475 = vmatpush1.msra.mxu0 0.0
        %476 = vmatprep.subr.mxu0 0.0
        %477 = vmatpush1.msra.mxu0 0.0
        %478 = vmatprep.subr.mxu0 0.0
        %479 = vmatpush1.msra.mxu0 0.0
        %480 = vmatprep.subr.mxu0 0.0
        %481 = vmatpush1.msra.mxu0 0.0
        %482 = vmatprep.subr.mxu0 0.0
        %483 = vmatpush1.msra.mxu0 0.0
        %484 = vmatprep.subr.mxu0 0.0
        %485 = vmatpush1.msra.mxu0 0.0
        %486 = vmatprep.subr.mxu0 0.0
        %487 = vmatpush1.msra.mxu0 0.0
        %488 = vmatprep.subr.mxu0 0.0
        %489 = vmatpush1.msra.mxu0 0.0
        %490 = vmatprep.subr.mxu0 0.0
        %491 = vmatpush1.msra.mxu0 0.0
        %492 = vmatprep.subr.mxu0 0.0
        %493 = vmatpush1.msra.mxu0 0.0
        %494 = vmatprep.mubr.f32.mxu0 0.0
        %495 = vmatmul.mubr.f32.gmra.mrb[0].mxu0 %v425
        %v496 = vpop.f32.mrb[0].mxu0
        %v497 = vadd.f32 %v416, %v496
        %v498 = vpop.f32.mrb[0].mxu0
        %v499 = vadd.f32 %v416, %v498
        %500 = vmatprep.mubr.f32.mxu0 0.0
        %501 = vmatmul.mubr.f32.gmra.mrb[0].mxu0 %v428
        %v502 = vpop.f32.mrb[0].mxu0
        %v503 = vadd.f32 %v421, %v502
        %v504 = vpop.f32.mrb[0].mxu0
        %v505 = vadd.f32 %v421, %v504
        %506 = vdwg.mxu0
        %v507 = vmax.f32 %v497, 0.0
        %v508 = vmax.f32 %v499, 0.0
        %v509 = vmax.f32 %v503, 0.0
        %v510 = vmax.f32 %v505, 0.0
        %v511 = vld [vmem:[%s391] sm:$0xff]
        %v512 = vld [vmem:[%s391 + $0x8] sm:$0xff]
        %v513 = vld [vmem:[%s391 + $0x10] sm:$0xff]
        %v514 = vld [vmem:[%s391 + $0x18] sm:$0xff]
        %v515 = vld [vmem:[%s391 + $0x20] sm:$0xff]
        %v516 = vld [vmem:[%s391 + $0x28] sm:$0xff]
        %v517 = vld [vmem:[%s391 + $0x30] sm:$0xff]
        %v518 = vld [vmem:[%s391 + $0x38] sm:$0xff]
        %519 = vmatprep.subr.mxu0 0.0
        %520 = vmatpush1.msra.mxu0 %v511
        %521 = vmatprep.subr.mxu0 0.0
        %522 = vmatpush1.msra.mxu0 %v512
        %523 = vmatprep.subr.mxu0 0.0
        %524 = vmatpush1.msra.mxu0 %v513
        %525 = vmatprep.subr.mxu0 0.0
        %526 = vmatpush1.msra.mxu0 %v514
        %527 = vmatprep.subr.mxu0 0.0
        %528 = vmatpush1.msra.mxu0 %v515
        %529 = vmatprep.subr.mxu0 0.0
        %530 = vmatpush1.msra.mxu0 %v516
        %531 = vmatprep.subr.mxu0 0.0
        %532 = vmatpush1.msra.mxu0 %v517
        %533 = vmatprep.subr.mxu0 0.0
        %534 = vmatpush1.msra.mxu0 %v518
        %535 = vmatprep.subr.mxu0 0.0
        %536 = vmatpush1.msra.mxu0 0.0
        %537 = vmatprep.subr.mxu0 0.0
        %538 = vmatpush1.msra.mxu0 0.0
        %539 = vmatprep.subr.mxu0 0.0
        %540 = vmatpush1.msra.mxu0 0.0
        %541 = vmatprep.subr.mxu0 0.0
        %542 = vmatpush1.msra.mxu0 0.0
        %543 = vmatprep.subr.mxu0 0.0
        %544 = vmatpush1.msra.mxu0 0.0
        %545 = vmatprep.subr.mxu0 0.0
        %546 = vmatpush1.msra.mxu0 0.0
        %547 = vmatprep.subr.mxu0 0.0
        %548 = vmatpush1.msra.mxu0 0.0
        %549 = vmatprep.subr.mxu0 0.0
        %550 = vmatpush1.msra.mxu0 0.0
        %551 = vmatprep.subr.mxu0 0.0
        %552 = vmatpush1.msra.mxu0 0.0
        %553 = vmatprep.subr.mxu0 0.0
        %554 = vmatpush1.msra.mxu0 0.0
        %555 = vmatprep.subr.mxu0 0.0
        %556 = vmatpush1.msra.mxu0 0.0
        %557 = vmatprep.subr.mxu0 0.0
        %558 = vmatpush1.msra.mxu0 0.0
        %559 = vmatprep.subr.mxu0 0.0
        %560 = vmatpush1.msra.mxu0 0.0
        %561 = vmatprep.subr.mxu0 0.0
        %562 = vmatpush1.msra.mxu0 0.0
        %563 = vmatprep.subr.mxu0 0.0
        %564 = vmatpush1.msra.mxu0 0.0
        %565 = vmatprep.subr.mxu0 0.0
        %566 = vmatpush1.msra.mxu0 0.0
        %567 = vmatprep.subr.mxu0 0.0
        %568 = vmatpush1.msra.mxu0 0.0
        %569 = vmatprep.subr.mxu0 0.0
        %570 = vmatpush1.msra.mxu0 0.0
        %571 = vmatprep.subr.mxu0 0.0
        %572 = vmatpush1.msra.mxu0 0.0
        %573 = vmatprep.subr.mxu0 0.0
        %574 = vmatpush1.msra.mxu0 0.0
        %575 = vmatprep.subr.mxu0 0.0
        %576 = vmatpush1.msra.mxu0 0.0
        %577 = vmatprep.subr.mxu0 0.0
        %578 = vmatpush1.msra.mxu0 0.0
        %579 = vmatprep.subr.mxu0 0.0
        %580 = vmatpush1.msra.mxu0 0.0
        %581 = vmatprep.subr.mxu0 0.0
        %582 = vmatpush1.msra.mxu0 0.0
        %583 = vmatprep.mubr.f32.mxu0 0.0
        %584 = vmatmul.mubr.f32.gmra.mrb[0].mxu0 %v425
        %v585 = vpop.f32.mrb[0].mxu0
        %v586 = vadd.f32 %v416, %v585
        %v587 = vpop.f32.mrb[0].mxu0
        %588 = vmatprep.mubr.f32.mxu0 0.0
        %589 = vmatmul.mubr.f32.gmra.mrb[0].mxu0 %v428
        %v590 = vpop.f32.mrb[0].mxu0
        %v591 = vadd.f32 %v421, %v590
        %v592 = vpop.f32.mrb[0].mxu0
        %593 = vdwg.mxu0
        %v594 = vmax.f32 %v586, 0.0
        %v595 = vmax.f32 %v591, 0.0
        %p596 = scmp.gt.s32.totalorder %s31, 0
        %s597 = scalar_select %p596, 1, 0
        %s598 = scvt.s32.f32 %s597
        %p599 = scmp.lt.s32.totalorder %s31, 0
        %s600 = scalar_select %p599, 1, 0
        %s601 = scvt.s32.f32 %s600
        %vm602 = vcmask 785408
        %603 = vst.msk [vmem:[#allocation2] sm:$0xff] %vm602, 0.0
        %604 = vst.msk [vmem:[#allocation2 + $0x20] sm:$0xff] %vm602, 0.0
        %v605 = vstv %s598
        %v606 = vmul.f32 %v594, %v605
        %v607 = vmul.f32 %v595, %v605
        %610 = vrot.lane.b32.xlu0 %v606, 96
        %v611 = vpop.permute.xlu0 %610
        %612 = vrot.lane.b32.xlu0 %v607, 96
        %v613 = vpop.permute.xlu0 %612
        %vm616 = vcmask 1048320
        %617 = vst.msk [vmem:[#allocation2] sm:$0xff] %vm616, %v611
        %618 = vst.msk [vmem:[#allocation2 + $0x20] sm:$0xff] %vm616, %v613
        %619 = vst [vmem:[#allocation2 + $0x8] sm:$0xff] %v507
        %620 = vst [vmem:[#allocation2 + $0x10] sm:$0xff] %v508
        %621 = vst [vmem:[#allocation2 + $0x28] sm:$0xff] %v509
        %622 = vst [vmem:[#allocation2 + $0x30] sm:$0xff] %v510
        %v623 = vstv %s601
        %v624 = vmul.f32 %v594, %v623
        %v625 = vmul.f32 %v595, %v623
        %628 = vrot.lane.b32.xlu0 %v624, 96
        %v629 = vpop.permute.xlu0 %628
        %630 = vrot.lane.b32.xlu0 %v625, 96
        %v631 = vpop.permute.xlu0 %630
        %vm634 = vcmask 261120
        %635 = vst.msk [vmem:[#allocation2 + $0x18] sm:$0xff] %vm634, %v629
        %636 = vst.msk [vmem:[#allocation2 + $0x38] sm:$0xff] %vm634, %v631
        %vm637 = vcmask 1047808
        %638 = vst.msk [vmem:[#allocation2 + $0x18] sm:$0xff] %vm637, 0.0
        %639 = vst.msk [vmem:[#allocation2 + $0x38] sm:$0xff] %vm637, 0.0
        %v640 = vlaneseq
        %v641 = vand.u32 %v640, 127
        %v642 = vadd.s32 %v641, 128
        %vm643 = vcmp.lt.s32.totalorder %v641, 0
        %v644 = vsub.s32 0, %v641
        %v645 = vsel %vm643, %v644, %v641
        %v646 = vshrl.u32 %v645, 4
        %v647 = vand.u32 %v645, 15
        %v648 = vsub.s32 0, %v647
        %v649 = vsel %vm643, %v648, %v647
        %vm650 = vcmp.lt.s32.totalorder %v642, 0
        %v651 = vsub.s32 0, %v642
        %v652 = vsel %vm650, %v651, %v642
        %v653 = vshrl.u32 %v652, 4
        %v654 = vand.u32 %v652, 15
        %v655 = vsub.s32 0, %v654
        %v656 = vsel %vm650, %v655, %v654
        %vm657 = vcmp.ne.s32.totalorder %v649, 0
        %vm658 = vcmp.ne.s32.totalorder %v656, 0
        %vm659 = vcmp.lt.s32.totalorder %v649, 0
        %vm660 = vcmp.lt.s32.totalorder %v656, 0
        %vm661 = vmand %vm659, %vm657
        %vm662 = vmand %vm660, %vm658
        %v663 = vadd.s32 %v649, 16
        %v664 = vadd.s32 %v656, 16
        %v665 = vsel %vm661, %v663, %v649
        %v666 = vsel %vm662, %v664, %v656
        %vm667 = vcmp.ge.s32.totalorder %v665, 2
        %vm668 = vcmp.ge.s32.totalorder %v666, 2
        %vm669 = vcmp.lt.s32.totalorder %v665, 14
        %vm670 = vcmp.lt.s32.totalorder %v666, 14
        %v671 = vld [vmem:[#allocation2] sm:$0xff]
        %v672 = vld [vmem:[#allocation2 + $0x8] sm:$0xff]
        %v673 = vld [vmem:[#allocation2 + $0x10] sm:$0xff]
        %v674 = vld [vmem:[#allocation2 + $0x20] sm:$0xff]
        %v675 = vld [vmem:[#allocation2 + $0x28] sm:$0xff]
        %v676 = vld [vmem:[#allocation2 + $0x30] sm:$0xff]
        %v677 = vsel %vm667, 1, 0
        %v678 = vsel %vm668, 1, 0
        %vm679 = vcmp.eq.s32.totalorder %v677, 1
        %vm680 = vcmp.eq.s32.totalorder %v678, 1
        %687 = vrot.lane.b32.xlu0 %v671, 34
        %v688 = vpop.permute.xlu0 %687
        %689 = vrot.lane.b32.xlu0 %v672, 34
        %v690 = vpop.permute.xlu0 %689
        %691 = vrot.lane.b32.xlu0 %v673, 34
        %v692 = vpop.permute.xlu0 %691
        %693 = vrot.lane.b32.xlu0 %v674, 34
        %v694 = vpop.permute.xlu0 %693
        %695 = vrot.lane.b32.xlu0 %v675, 34
        %v696 = vpop.permute.xlu0 %695
        %697 = vrot.lane.b32.xlu0 %v676, 34
        %v698 = vpop.permute.xlu0 %697
        %vm699 = vcmask 277504
        %v700 = vsel %vm699, %v688, %v690
        %v701 = vsel %vm699, %v690, %v692
        %v702 = vsel %vm699, %v694, %v696
        %v703 = vsel %vm699, %v696, %v698
        %v708 = vsel %vm679, %v700, 0.0
        %v709 = vsel %vm680, %v701, 0.0
        %v710 = vsel %vm679, %v702, 0.0
        %v711 = vsel %vm680, %v703, 0.0
        %v712 = vsel %vm669, 1, 0
        %v713 = vsel %vm670, 1, 0
        %vm714 = vcmp.eq.s32.totalorder %v712, 1
        %vm715 = vcmp.eq.s32.totalorder %v713, 1
        %716 = vrot.lane.b32.xlu0 %v671, 30
        %v717 = vpop.permute.xlu0 %716
        %718 = vrot.lane.b32.xlu0 %v672, 30
        %v719 = vpop.permute.xlu0 %718
        %720 = vrot.lane.b32.xlu0 %v673, 30
        %v721 = vpop.permute.xlu0 %720
        %722 = vrot.lane.b32.xlu0 %v674, 30
        %v723 = vpop.permute.xlu0 %722
        %724 = vrot.lane.b32.xlu0 %v675, 30
        %v725 = vpop.permute.xlu0 %724
        %726 = vrot.lane.b32.xlu0 %v676, 30
        %v727 = vpop.permute.xlu0 %726
        %vm728 = vcmask 244736
        %v729 = vsel %vm728, %v717, %v719
        %v730 = vsel %vm728, %v719, %v721
        %v731 = vsel %vm728, %v723, %v725
        %v732 = vsel %vm728, %v725, %v727
        %v737 = vsel %vm714, %v729, 0.0
        %v738 = vsel %vm715, %v730, 0.0
        %v739 = vsel %vm714, %v731, 0.0
        %v740 = vsel %vm715, %v732, 0.0
        %741 = vrot.lane.b32.xlu0 %v671, 2
        %v742 = vpop.permute.xlu0 %741
        %743 = vrot.lane.b32.xlu0 %v672, 2
        %v744 = vpop.permute.xlu0 %743
        %745 = vrot.lane.b32.xlu0 %v673, 2
        %v746 = vpop.permute.xlu0 %745
        %747 = vrot.lane.b32.xlu0 %v674, 2
        %v748 = vpop.permute.xlu0 %747
        %749 = vrot.lane.b32.xlu0 %v675, 2
        %v750 = vpop.permute.xlu0 %749
        %751 = vrot.lane.b32.xlu0 %v676, 2
        %v752 = vpop.permute.xlu0 %751
        %vm753 = vcmask 15360
        %v754 = vsel %vm753, %v742, %v744
        %v755 = vsel %vm753, %v744, %v746
        %v756 = vsel %vm753, %v748, %v750
        %v757 = vsel %vm753, %v750, %v752
        %v762 = vsel %vm679, %v754, 0.0
        %v763 = vsel %vm680, %v755, 0.0
        %v764 = vsel %vm679, %v756, 0.0
        %v765 = vsel %vm680, %v757, 0.0
        %v766 = vld [vmem:[#allocation2 + $0x8] sm:$0xff]
        %v767 = vld [vmem:[#allocation2 + $0x10] sm:$0xff]
        %v768 = vld [vmem:[#allocation2 + $0x18] sm:$0xff]
        %v769 = vld [vmem:[#allocation2 + $0x28] sm:$0xff]
        %v770 = vld [vmem:[#allocation2 + $0x30] sm:$0xff]
        %v771 = vld [vmem:[#allocation2 + $0x38] sm:$0xff]
        %778 = vrot.lane.b32.xlu0 %v766, 126
        %v779 = vpop.permute.xlu0 %778
        %780 = vrot.lane.b32.xlu0 %v767, 126
        %v781 = vpop.permute.xlu0 %780
        %782 = vrot.lane.b32.xlu0 %v768, 126
        %v783 = vpop.permute.xlu0 %782
        %784 = vrot.lane.b32.xlu0 %v769, 126
        %v785 = vpop.permute.xlu0 %784
        %786 = vrot.lane.b32.xlu0 %v770, 126
        %v787 = vpop.permute.xlu0 %786
        %788 = vrot.lane.b32.xlu0 %v771, 126
        %v789 = vpop.permute.xlu0 %788
        %vm790 = vcmask 1031168
        %v791 = vsel %vm790, %v779, %v781
        %v792 = vsel %vm790, %v781, %v783
        %v793 = vsel %vm790, %v785, %v787
        %v794 = vsel %vm790, %v787, %v789
        %v799 = vsel %vm714, %v791, 0.0
        %v800 = vsel %vm715, %v792, 0.0
        %v801 = vsel %vm714, %v793, 0.0
        %v802 = vsel %vm715, %v794, 0.0
        %803 = vrot.lane.b32.xlu0 %v766, 98
        %v804 = vpop.permute.xlu0 %803
        %805 = vrot.lane.b32.xlu0 %v767, 98
        %v806 = vpop.permute.xlu0 %805
        %807 = vrot.lane.b32.xlu0 %v768, 98
        %v808 = vpop.permute.xlu0 %807
        %809 = vrot.lane.b32.xlu0 %v769, 98
        %v810 = vpop.permute.xlu0 %809
        %811 = vrot.lane.b32.xlu0 %v770, 98
        %v812 = vpop.permute.xlu0 %811
        %813 = vrot.lane.b32.xlu0 %v771, 98
        %v814 = vpop.permute.xlu0 %813
        %vm815 = vcmask 801792
        %v816 = vsel %vm815, %v804, %v806
        %v817 = vsel %vm815, %v806, %v808
        %v818 = vsel %vm815, %v810, %v812
        %v819 = vsel %vm815, %v812, %v814
        %v824 = vsel %vm679, %v816, 0.0
        %v825 = vsel %vm680, %v817, 0.0
        %v826 = vsel %vm679, %v818, 0.0
        %v827 = vsel %vm680, %v819, 0.0
        %828 = vrot.lane.b32.xlu0 %v766, 94
        %v829 = vpop.permute.xlu0 %828
        %830 = vrot.lane.b32.xlu0 %v767, 94
        %v831 = vpop.permute.xlu0 %830
        %832 = vrot.lane.b32.xlu0 %v768, 94
        %v833 = vpop.permute.xlu0 %832
        %834 = vrot.lane.b32.xlu0 %v769, 94
        %v835 = vpop.permute.xlu0 %834
        %836 = vrot.lane.b32.xlu0 %v770, 94
        %v837 = vpop.permute.xlu0 %836
        %838 = vrot.lane.b32.xlu0 %v771, 94
        %v839 = vpop.permute.xlu0 %838
        %vm840 = vcmask 769024
        %v841 = vsel %vm840, %v829, %v831
        %v842 = vsel %vm840, %v831, %v833
        %v843 = vsel %vm840, %v835, %v837
        %v844 = vsel %vm840, %v837, %v839
        %v849 = vsel %vm714, %v841, 0.0
        %v850 = vsel %vm715, %v842, 0.0
        %v851 = vsel %vm714, %v843, 0.0
        %v852 = vsel %vm715, %v844, 0.0
        %853 = vrot.lane.b32.xlu0 %v671, 32
        %v854 = vpop.permute.xlu0 %853
        %855 = vrot.lane.b32.xlu0 %v672, 32
        %v856 = vpop.permute.xlu0 %855
        %857 = vrot.lane.b32.xlu0 %v673, 32
        %v858 = vpop.permute.xlu0 %857
        %859 = vrot.lane.b32.xlu0 %v674, 32
        %v860 = vpop.permute.xlu0 %859
        %861 = vrot.lane.b32.xlu0 %v675, 32
        %v862 = vpop.permute.xlu0 %861
        %863 = vrot.lane.b32.xlu0 %v676, 32
        %v864 = vpop.permute.xlu0 %863
        %v865 = vsel %vm634, %v854, %v856
        %v866 = vsel %vm634, %v856, %v858
        %v867 = vsel %vm634, %v860, %v862
        %v868 = vsel %vm634, %v862, %v864
        %873 = vrot.lane.b32.xlu0 %v766, 96
        %v874 = vpop.permute.xlu0 %873
        %875 = vrot.lane.b32.xlu0 %v767, 96
        %v876 = vpop.permute.xlu0 %875
        %877 = vrot.lane.b32.xlu0 %v768, 96
        %v878 = vpop.permute.xlu0 %877
        %879 = vrot.lane.b32.xlu0 %v769, 96
        %v880 = vpop.permute.xlu0 %879
        %881 = vrot.lane.b32.xlu0 %v770, 96
        %v882 = vpop.permute.xlu0 %881
        %883 = vrot.lane.b32.xlu0 %v771, 96
        %v884 = vpop.permute.xlu0 %883
        %v885 = vsel %vm602, %v874, %v876
        %v886 = vsel %vm602, %v876, %v878
        %v887 = vsel %vm602, %v880, %v882
        %v888 = vsel %vm602, %v882, %v884
        %v893 = vld [vmem:[%s4] sm:$0xff]
        %v894 = vld [vmem:[%s4 + $0x8] sm:$0xff]
        %v895 = vld [vmem:[%s4 + $0x10] sm:$0xff]
        %v896 = vld [vmem:[%s4 + $0x18] sm:$0xff]
        %v897 = vld [vmem:[%s5] sm:$0xff]
        %v898 = vld [vmem:[%s5 + $0x8] sm:$0xff]
        %900 = vset.pattern.permute.xlu0 0
        %901 = vperm.xlu0 %900, %v897
        %v902 = vpop.permute.xlu0 %901
        %905 = vset.pattern.permute.xlu0 0
        %906 = vperm.xlu0 %905, %v898
        %v907 = vpop.permute.xlu0 %906
        %vm909 = vcmask 130048
        %v911 = vsel %vm909, %v894, 0
        %v914 = vsel %vm909, %v896, 0
        %916 = vmatprep.subr.mxu0 %v709
        %917 = vmatpush1.msra.mxu0 %v708
        %918 = vmatprep.subr.mxu0 %v711
        %919 = vmatpush1.msra.mxu0 %v710
        %920 = vmatprep.subr.mxu0 %v866
        %921 = vmatpush1.msra.mxu0 %v865
        %922 = vmatprep.subr.mxu0 %v868
        %923 = vmatpush1.msra.mxu0 %v867
        %924 = vmatprep.subr.mxu0 %v738
        %925 = vmatpush1.msra.mxu0 %v737
        %926 = vmatprep.subr.mxu0 %v740
        %927 = vmatpush1.msra.mxu0 %v739
        %928 = vmatprep.subr.mxu0 %v763
        %929 = vmatpush1.msra.mxu0 %v762
        %930 = vmatprep.subr.mxu0 %v765
        %931 = vmatpush1.msra.mxu0 %v764
        %932 = vmatprep.subr.mxu0 %v673
        %933 = vmatpush1.msra.mxu0 %v672
        %934 = vmatprep.subr.mxu0 %v676
        %935 = vmatpush1.msra.mxu0 %v675
        %936 = vmatprep.subr.mxu0 %v800
        %937 = vmatpush1.msra.mxu0 %v799
        %938 = vmatprep.subr.mxu0 %v802
        %939 = vmatpush1.msra.mxu0 %v801
        %940 = vmatprep.subr.mxu0 %v825
        %941 = vmatpush1.msra.mxu0 %v824
        %942 = vmatprep.subr.mxu0 %v827
        %943 = vmatpush1.msra.mxu0 %v826
        %944 = vmatprep.subr.mxu0 %v886
        %945 = vmatpush1.msra.mxu0 %v885
        %946 = vmatprep.subr.mxu0 %v888
        %947 = vmatpush1.msra.mxu0 %v887
        %948 = vmatprep.subr.mxu0 %v850
        %949 = vmatpush1.msra.mxu0 %v849
        %950 = vmatprep.subr.mxu0 %v852
        %951 = vmatpush1.msra.mxu0 %v851
        %952 = vmatprep.subr.mxu0 0.0
        %953 = vmatpush1.msra.mxu0 0.0
        %954 = vmatprep.subr.mxu0 0.0
        %955 = vmatpush1.msra.mxu0 0.0
        %956 = vmatprep.subr.mxu0 0.0
        %957 = vmatpush1.msra.mxu0 0.0
        %958 = vmatprep.subr.mxu0 0.0
        %959 = vmatpush1.msra.mxu0 0.0
        %960 = vmatprep.subr.mxu0 0.0
        %961 = vmatpush1.msra.mxu0 0.0
        %962 = vmatprep.subr.mxu0 0.0
        %963 = vmatpush1.msra.mxu0 0.0
        %964 = vmatprep.subr.mxu0 0.0
        %965 = vmatpush1.msra.mxu0 0.0
        %966 = vmatprep.subr.mxu0 0.0
        %967 = vmatpush1.msra.mxu0 0.0
        %968 = vmatprep.subr.mxu0 0.0
        %969 = vmatpush1.msra.mxu0 0.0
        %970 = vmatprep.subr.mxu0 0.0
        %971 = vmatpush1.msra.mxu0 0.0
        %972 = vmatprep.subr.mxu0 0.0
        %973 = vmatpush1.msra.mxu0 0.0
        %974 = vmatprep.subr.mxu0 0.0
        %975 = vmatpush1.msra.mxu0 0.0
        %976 = vmatprep.subr.mxu0 0.0
        %977 = vmatpush1.msra.mxu0 0.0
        %978 = vmatprep.subr.mxu0 0.0
        %979 = vmatpush1.msra.mxu0 0.0
        %980 = vmatprep.mubr.f32.mxu0 %v911
        %981 = vmatmul.mubr.f32.gmra.mrb[0].mxu0 %v893
        %v982 = vpop.f32.mrb[0].mxu0
        %v983 = vadd.f32 %v902, %v982
        %v984 = vpop.f32.mrb[0].mxu0
        %v985 = vadd.f32 %v902, %v984
        %986 = vmatprep.mubr.f32.mxu0 %v914
        %987 = vmatmul.mubr.f32.gmra.mrb[0].mxu0 %v895
        %v988 = vpop.f32.mrb[0].mxu0
        %v989 = vadd.f32 %v907, %v988
        %v990 = vpop.f32.mrb[0].mxu0
        %v991 = vadd.f32 %v907, %v990
        %992 = vdwg.mxu0
        %v993 = vmax.f32 %v983, 0.0
        %v994 = vmax.f32 %v985, 0.0
        %v995 = vmax.f32 %v989, 0.0
        %v996 = vmax.f32 %v991, 0.0
        %v997 = vld [vmem:[%s6] sm:$0xff]
        %v998 = vld [vmem:[%s6 + $0x8] sm:$0xff]
        %v999 = vld [vmem:[%s6 + $0x10] sm:$0xff]
        %v1000 = vld [vmem:[%s6 + $0x18] sm:$0xff]
        %v1001 = vld [vmem:[%s6 + $0x20] sm:$0xff]
        %v1002 = vld [vmem:[%s6 + $0x28] sm:$0xff]
        %v1003 = vld [vmem:[%s6 + $0x30] sm:$0xff]
        %v1004 = vld [vmem:[%s6 + $0x38] sm:$0xff]
        %v1005 = vld [vmem:[%s7] sm:$0xff]
        %v1006 = vld [vmem:[%s7 + $0x8] sm:$0xff]
        %v1007 = vld [vmem:[%s7 + $0x10] sm:$0xff]
        %v1008 = vld [vmem:[%s7 + $0x18] sm:$0xff]
        %v1009 = vld [vmem:[%s7 + $0x20] sm:$0xff]
        %v1010 = vld [vmem:[%s7 + $0x28] sm:$0xff]
        %v1011 = vld [vmem:[%s7 + $0x30] sm:$0xff]
        %v1012 = vld [vmem:[%s7 + $0x38] sm:$0xff]
        %1014 = vset.pattern.permute.xlu0 0
        %1015 = vperm.xlu0 %1014, %v1005
        %v1016 = vpop.permute.xlu0 %1015
        %1019 = vset.pattern.permute.xlu0 0
        %1020 = vperm.xlu0 %1019, %v1006
        %v1021 = vpop.permute.xlu0 %1020
        %1024 = vset.pattern.permute.xlu0 0
        %1025 = vperm.xlu0 %1024, %v1007
        %v1026 = vpop.permute.xlu0 %1025
        %1029 = vset.pattern.permute.xlu0 0
        %1030 = vperm.xlu0 %1029, %v1008
        %v1031 = vpop.permute.xlu0 %1030
        %1034 = vset.pattern.permute.xlu0 0
        %1035 = vperm.xlu0 %1034, %v1009
        %v1036 = vpop.permute.xlu0 %1035
        %1039 = vset.pattern.permute.xlu0 0
        %1040 = vperm.xlu0 %1039, %v1010
        %v1041 = vpop.permute.xlu0 %1040
        %1044 = vset.pattern.permute.xlu0 0
        %1045 = vperm.xlu0 %1044, %v1011
        %v1046 = vpop.permute.xlu0 %1045
        %1049 = vset.pattern.permute.xlu0 0
        %1050 = vperm.xlu0 %1049, %v1012
        %v1051 = vpop.permute.xlu0 %1050
        %v1054 = vsel %vm909, %v997, 0
        %v1057 = vsel %vm909, %v998, 0
        %v1060 = vsel %vm909, %v999, 0
        %v1063 = vsel %vm909, %v1000, 0
        %v1066 = vsel %vm909, %v1001, 0
        %v1069 = vsel %vm909, %v1002, 0
        %v1072 = vsel %vm909, %v1003, 0
        %v1075 = vsel %vm909, %v1004, 0
        %1077 = vmatprep.subr.mxu0 %v994
        %1078 = vmatpush1.msra.mxu0 %v993
        %1079 = vmatprep.subr.mxu0 %v996
        %1080 = vmatpush1.msra.mxu0 %v995
        %1081 = vmatprep.subr.mxu0 0.0
        %1082 = vmatpush1.msra.mxu0 0.0
        %1083 = vmatprep.subr.mxu0 0.0
        %1084 = vmatpush1.msra.mxu0 0.0
        %1085 = vmatprep.subr.mxu0 0.0
        %1086 = vmatpush1.msra.mxu0 0.0
        %1087 = vmatprep.subr.mxu0 0.0
        %1088 = vmatpush1.msra.mxu0 0.0
        %1089 = vmatprep.subr.mxu0 0.0
        %1090 = vmatpush1.msra.mxu0 0.0
        %1091 = vmatprep.subr.mxu0 0.0
        %1092 = vmatpush1.msra.mxu0 0.0
        %1093 = vmatprep.subr.mxu0 0.0
        %1094 = vmatpush1.msra.mxu0 0.0
        %1095 = vmatprep.subr.mxu0 0.0
        %1096 = vmatpush1.msra.mxu0 0.0
        %1097 = vmatprep.subr.mxu0 0.0
        %1098 = vmatpush1.msra.mxu0 0.0
        %1099 = vmatprep.subr.mxu0 0.0
        %1100 = vmatpush1.msra.mxu0 0.0
        %1101 = vmatprep.subr.mxu0 0.0
        %1102 = vmatpush1.msra.mxu0 0.0
        %1103 = vmatprep.subr.mxu0 0.0
        %1104 = vmatpush1.msra.mxu0 0.0
        %1105 = vmatprep.subr.mxu0 0.0
        %1106 = vmatpush1.msra.mxu0 0.0
        %1107 = vmatprep.subr.mxu0 0.0
        %1108 = vmatpush1.msra.mxu0 0.0
        %1109 = vmatprep.subr.mxu0 0.0
        %1110 = vmatpush1.msra.mxu0 0.0
        %1111 = vmatprep.subr.mxu0 0.0
        %1112 = vmatpush1.msra.mxu0 0.0
        %1113 = vmatprep.subr.mxu0 0.0
        %1114 = vmatpush1.msra.mxu0 0.0
        %1115 = vmatprep.subr.mxu0 0.0
        %1116 = vmatpush1.msra.mxu0 0.0
        %1117 = vmatprep.subr.mxu0 0.0
        %1118 = vmatpush1.msra.mxu0 0.0
        %1119 = vmatprep.subr.mxu0 0.0
        %1120 = vmatpush1.msra.mxu0 0.0
        %1121 = vmatprep.subr.mxu0 0.0
        %1122 = vmatpush1.msra.mxu0 0.0
        %1123 = vmatprep.subr.mxu0 0.0
        %1124 = vmatpush1.msra.mxu0 0.0
        %1125 = vmatprep.subr.mxu0 0.0
        %1126 = vmatpush1.msra.mxu0 0.0
        %1127 = vmatprep.subr.mxu0 0.0
        %1128 = vmatpush1.msra.mxu0 0.0
        %1129 = vmatprep.subr.mxu0 0.0
        %1130 = vmatpush1.msra.mxu0 0.0
        %1131 = vmatprep.subr.mxu0 0.0
        %1132 = vmatpush1.msra.mxu0 0.0
        %1133 = vmatprep.subr.mxu0 0.0
        %1134 = vmatpush1.msra.mxu0 0.0
        %1135 = vmatprep.subr.mxu0 0.0
        %1136 = vmatpush1.msra.mxu0 0.0
        %1137 = vmatprep.subr.mxu0 0.0
        %1138 = vmatpush1.msra.mxu0 0.0
        %1139 = vmatprep.subr.mxu0 0.0
        %1140 = vmatpush1.msra.mxu0 0.0
        %1141 = vmatprep.mubr.f32.mxu0 0.0
        %1142 = vmatmul.mubr.f32.gmra.mrb[0].mxu0 %v1054
        %v1143 = vpop.f32.mrb[0].mxu0
        %v1144 = vadd.f32 %v1016, %v1143
        %v1145 = vpop.f32.mrb[0].mxu0
        %v1146 = vadd.f32 %v1016, %v1145
        %1147 = vmatprep.mubr.f32.mxu0 0.0
        %1148 = vmatmul.mubr.f32.gmra.mrb[0].mxu0 %v1057
        %v1149 = vpop.f32.mrb[0].mxu0
        %v1150 = vadd.f32 %v1021, %v1149
        %v1151 = vpop.f32.mrb[0].mxu0
        %v1152 = vadd.f32 %v1021, %v1151
        %1153 = vmatprep.mubr.f32.mxu0 0.0
        %1154 = vmatmul.mubr.f32.gmra.mrb[0].mxu0 %v1060
        %v1155 = vpop.f32.mrb[0].mxu0
        %v1156 = vadd.f32 %v1026, %v1155
        %v1157 = vpop.f32.mrb[0].mxu0
        %v1158 = vadd.f32 %v1026, %v1157
        %1159 = vmatprep.mubr.f32.mxu0 0.0
        %1160 = vmatmul.mubr.f32.gmra.mrb[0].mxu0 %v1063
        %v1161 = vpop.f32.mrb[0].mxu0
        %v1162 = vadd.f32 %v1031, %v1161
        %v1163 = vpop.f32.mrb[0].mxu0
        %v1164 = vadd.f32 %v1031, %v1163
        %1165 = vmatprep.mubr.f32.mxu0 0.0
        %1166 = vmatmul.mubr.f32.gmra.mrb[0].mxu0 %v1066
        %v1167 = vpop.f32.mrb[0].mxu0
        %v1168 = vadd.f32 %v1036, %v1167
        %v1169 = vpop.f32.mrb[0].mxu0
        %v1170 = vadd.f32 %v1036, %v1169
        %1171 = vmatprep.mubr.f32.mxu0 0.0
        %1172 = vmatmul.mubr.f32.gmra.mrb[0].mxu0 %v1069
        %v1173 = vpop.f32.mrb[0].mxu0
        %v1174 = vadd.f32 %v1041, %v1173
        %v1175 = vpop.f32.mrb[0].mxu0
        %v1176 = vadd.f32 %v1041, %v1175
        %1177 = vmatprep.mubr.f32.mxu0 0.0
        %1178 = vmatmul.mubr.f32.gmra.mrb[0].mxu0 %v1072
        %v1179 = vpop.f32.mrb[0].mxu0
        %v1180 = vadd.f32 %v1046, %v1179
        %v1181 = vpop.f32.mrb[0].mxu0
        %v1182 = vadd.f32 %v1046, %v1181
        %1183 = vmatprep.mubr.f32.mxu0 0.0
        %1184 = vmatmul.mubr.f32.gmra.mrb[0].mxu0 %v1075
        %v1185 = vpop.f32.mrb[0].mxu0
        %v1186 = vadd.f32 %v1051, %v1185
        %v1187 = vpop.f32.mrb[0].mxu0
        %v1188 = vadd.f32 %v1051, %v1187
        %1189 = vdwg.mxu0
        %v1190 = vadd.f32 %v1144, %v393
        %v1191 = vadd.f32 %v1146, %v394
        %v1192 = vadd.f32 %v1150, %v395
        %v1193 = vadd.f32 %v1152, %v396
        %v1194 = vadd.f32 %v1156, %v397
        %v1195 = vadd.f32 %v1158, %v398
        %v1196 = vadd.f32 %v1162, %v399
        %v1197 = vadd.f32 %v1164, %v400
        %v1198 = vadd.f32 %v1168, %v401
        %v1199 = vadd.f32 %v1170, %v402
        %v1200 = vadd.f32 %v1174, %v403
        %v1201 = vadd.f32 %v1176, %v404
        %v1202 = vadd.f32 %v1180, %v405
        %v1203 = vadd.f32 %v1182, %v406
        %v1204 = vadd.f32 %v1186, %v407
        %v1205 = vadd.f32 %v1188, %v408
        %v1206 = vmax.f32 %v1190, 0.0
        %v1207 = vmax.f32 %v1191, 0.0
        %v1208 = vmax.f32 %v1192, 0.0
        %v1209 = vmax.f32 %v1193, 0.0
        %v1210 = vmax.f32 %v1194, 0.0
        %v1211 = vmax.f32 %v1195, 0.0
        %v1212 = vmax.f32 %v1196, 0.0
        %v1213 = vmax.f32 %v1197, 0.0
        %v1214 = vmax.f32 %v1198, 0.0
        %v1215 = vmax.f32 %v1199, 0.0
        %v1216 = vmax.f32 %v1200, 0.0
        %v1217 = vmax.f32 %v1201, 0.0
        %v1218 = vmax.f32 %v1202, 0.0
        %v1219 = vmax.f32 %v1203, 0.0
        %v1220 = vmax.f32 %v1204, 0.0
        %v1221 = vmax.f32 %v1205, 0.0
        %1222 = vst [vmem:[%s381] sm:$0xff] %v1206
        %1223 = vst [vmem:[%s381 + $0x8] sm:$0xff] %v1207
        %1224 = vst [vmem:[%s381 + $0x10] sm:$0xff] %v1208
        %1225 = vst [vmem:[%s381 + $0x18] sm:$0xff] %v1209
        %1226 = vst [vmem:[%s381 + $0x20] sm:$0xff] %v1210
        %1227 = vst [vmem:[%s381 + $0x28] sm:$0xff] %v1211
        %1228 = vst [vmem:[%s381 + $0x30] sm:$0xff] %v1212
        %1229 = vst [vmem:[%s381 + $0x38] sm:$0xff] %v1213
        %1230 = vst [vmem:[%s381 + $0x40] sm:$0xff] %v1214
        %1231 = vst [vmem:[%s381 + $0x48] sm:$0xff] %v1215
        %1232 = vst [vmem:[%s381 + $0x50] sm:$0xff] %v1216
        %1233 = vst [vmem:[%s381 + $0x58] sm:$0xff] %v1217
        %1234 = vst [vmem:[%s381 + $0x60] sm:$0xff] %v1218
        %1235 = vst [vmem:[%s381 + $0x68] sm:$0xff] %v1219
        %1236 = vst [vmem:[%s381 + $0x70] sm:$0xff] %v1220
        %1237 = vst [vmem:[%s381 + $0x78] sm:$0xff] %v1221
        %s1238 = sand.u32 %s230, 1
        %s1239 = scalar_lea.sflag [#allocation5], %s1238
        %s1240 = sand.u32 %s230, 1
        %s1241 = smul.addr %s1240, 128
        %s1242 = scalar_lea.vmem [#allocation8], %s1241
        // Predicated region
        $region61: #{tpu_custom_call.1} parent=51 // pred_check
          %p1243 = pneg %p240
        $region62: #{tpu_custom_call.1} parent=51 // pred_check_branch
          %1245 = sbr.rel (%p1243) target = $region64
        $region63: #{tpu_custom_call.1} parent=51 // pred_region
          %s1246 = smul.u32 2, %s31
          %s1248 = ssub.s32 2048, 2048
          %1249 = vsyncadd %s1239, %s1248
          %s1250 = smul.addr %s30, 16
          %s1251 = sadd.s32 %s1246, %s1250
          %s1252 = smul.addr %s1251, 128
          %s1253 = scalar_lea.hbm %s8, %s1252
          %s1254 = sshll.u32 %s1242, 4
          %s1255 = int_to_ptr.vmem [resolvable:$true] %s1254
          %1260 = dma.vmem_to_hbm [thread:$0]  %s1255, 2048, %s1253, %s1239, 256, 256, 16
        $region64: #{tpu_custom_call.1} parent=51 // pred_fallthru
          _
      $region52: #{tpu_custom_call.1} parent=5 // pred_fallthru
        _
      %p1261 = scmp.le.s32.totalorder 2, %s21
      // Predicated region
      $region65: #{tpu_custom_call.1} parent=5 // pred_check
        %p1262 = pneg %p1261
      $region66: #{tpu_custom_call.1} parent=5 // pred_check_branch
        %1264 = sbr.rel (%p1262) target = $region68
      $region67: #{tpu_custom_call.1} parent=5 // pred_region
        %s1265 = ssub.s32 %s21, 2
        // Predicated region
        $region69: #{tpu_custom_call.1} parent=67 // pred_check
          %p1266 = pneg %p246
        $region70: #{tpu_custom_call.1} parent=67 // pred_check_branch
          %1268 = sbr.rel (%p1266) target = $region72
        $region71: #{tpu_custom_call.1} parent=67 // pred_region
          %s1269 = sand.u32 %s231, 1
          %s1270 = scalar_lea.sflag [#allocation5], %s1269
          %s1271 = sand.u32 %s231, 1
          %s1272 = smul.addr %s1271, 128
          %s1273 = scalar_lea.vmem [#allocation8], %s1272
          %1274 = dma.done %s1270, 2048
        $region72: #{tpu_custom_call.1} parent=67 // pred_fallthru
          _
      $region68: #{tpu_custom_call.1} parent=5 // pred_fallthru
        _
    $region6: #{tpu_custom_call.1} parent=1 // loop_footer
      %s25 = sadd.s32 1, %s21
    $region7: #{tpu_custom_call.1} parent=1 // loop_footer_branch
      %20 = sbr.rel target = $region3
    $region8: #{tpu_custom_call.1} parent=1 // loop_exit
      _
    %1275 = vsyncpa [#allocation4], 1
    %s1276 = scalar_lea.sflag [#allocation4], 1
    %1277 = vsyncpa %s1276, 1
    %1278 = vsyncpa [#allocation7], 1
    %1279 = vsyncpa [#allocation5], 1
    %s1280 = scalar_lea.sflag [#allocation5], 1
    %1281 = vsyncpa %s1280, 1

</llo_original>
